<compile_context>
chip_gen: v6e
topology: v6e:2x2x1
jax: 0.10.0
libtpu: 0.0.40
codegen_flags: <defaults>
</compile_context>

<pallas_src>
import functools
import math

import jax
import jax.numpy as jnp
from jax.experimental import pallas as pl
from jax.experimental.pallas import tpu as pltpu


GRID_SIZE = 5
SPLINE_ORDER = 3
GRID_RANGE = (-1.0, 1.0)

LANE = 128      # TPU lane width (last dim)
SUBLANE = 8     # TPU sublane width (second-to-last dim)


def _round_up(n, m):
    return ((n + m - 1) // m) * m


def make_knots(grid_size=GRID_SIZE, spline_order=SPLINE_ORDER,
               grid_range=GRID_RANGE):
    """Uniform knot vector (same for every feature / layer, as in KANLinear)."""
    h = (grid_range[1] - grid_range[0]) / grid_size
    return tuple(
        float((j - spline_order) * h + grid_range[0])
        for j in range(grid_size + 2 * spline_order + 1)
    )


# ----------------------------------------------------------------------------
# Fused Pallas kernel: the entire KAN forward (all layers), one batch tile
# ----------------------------------------------------------------------------
def _make_kan_kernel(num_layers, knots, spline_order):
    M = len(knots)                       # grid_size + 2*spline_order + 1
    p = spline_order

    def kan_linear(x, w_ref):
        # ---- base branch: SiLU(x) ------------------------------------------
        base = x * jax.nn.sigmoid(x)

        # ---- unnormalized B-spline bases (Cox-de Boor, statically unrolled) -
        # The uniform-knot normalization 1/(p! * h^p) is folded into the
        # pre-packed spline weights at init, so the recursion is pure mul/sub.
        # Hoist t_j = x - knot_j once (knot_{j+k+1} - x == -t_{j+k+1}).
        t = [x - knots[j] for j in range(M)]

        # order-0: indicator of [knot_j, knot_{j+1})  (half-open, as in
        # efficient-kan: inputs exactly at/after the last knot get all-zero
        # spline bases; only the SiLU branch contributes there).
        bases = [
            jnp.where((x >= knots[j]) & (x < knots[j + 1]),
                      jnp.float32(1.0), jnp.float32(0.0))
            for j in range(M - 1)
        ]
        # recursion: 2 muls + 1 sub per term; rebinding `bases` lets
        # order-(k-1) arrays die immediately (bounds vreg pressure).
        for k in range(1, p + 1):
            bases = [
                t[j] * bases[j] - t[j + k + 1] * bases[j + 1]
                for j in range(M - 1 - k)
            ]
        # `bases` now holds C = M-1-p unnormalized order-p bases, each (TB, I).

        # ---- single fused MXU matmul (bf16 operands, f32 accumulate) --------
        # slab: (TB, (C+1)*I_pad) = [SiLU(x) | basis_0 | ... | basis_{C-1}],
        # every segment is I_pad (a multiple of 128) wide -> lane-aligned.
        # w_ref: ((C+1)*I_pad, O_pad) bf16, zero-padded rows/cols.
        slab = jnp.concatenate([base] + bases, axis=-1).astype(jnp.bfloat16)
        return jnp.dot(slab, w_ref[...], preferred_element_type=jnp.float32)

    def kernel(*refs):
        x_ref = refs[0]
        w_refs = refs[1:1 + num_layers]
        o_ref = refs[-1]

        h = x_ref[...].astype(jnp.float32)
        for w_ref in w_refs:             # whole network fused in one kernel
            h = kan_linear(h, w_ref)
        o_ref[...] = h.astype(o_ref.dtype)

    return kernel


def kan_forward(x, fused_weights, *, knots, spline_order=SPLINE_ORDER,
                out_features, tb=128):
    """Full KAN forward in one pallas_call.

    x: (B, in_features) float32.  fused_weights: list of bf16 arrays of shape
    ((C+1)*I_pad, O_pad) in the fused, lane-padded layout from init_kan.
    Returns (B, out_features) float32.
    """
    B, in_feats = x.shape
    M = len(knots)
    C = M - 1 - spline_order
    in_pad = fused_weights[0].shape[0] // (C + 1)
    out_pad = fused_weights[-1].shape[1]

    # ---- batch tile: multiple of 8, capped so the live spline temporaries
    # (~(M + C + 3) f32 arrays of (TB, I_pad) plus the bf16 slab) stay well
    # inside scoped VMEM on every generation (halve-the-v6e-tile rule for v7x
    # is covered by the conservative 8 MiB elementwise budget).
    i_max = max(w.shape[0] // (C + 1) for w in fused_weights)
    per_row_bytes = (M + C + 3) * i_max * 4 + (C + 1) * i_max * 2
    ew_budget = 8 * 2**20
    tb_cap = max(SUBLANE, (ew_budget // per_row_bytes) // SUBLANE * SUBLANE)
    TB = min(_round_up(tb, SUBLANE), tb_cap, _round_up(B, SUBLANE))
    TB = max(SUBLANE, _round_up(TB, SUBLANE))
    B_pad = _round_up(B, TB)

    # Pad batch and input features with zeros (zero weight rows make padded
    # features contribute exactly nothing; padded rows are sliced off).
    x_p = jnp.zeros((B_pad, in_pad), x.dtype).at[:B, :in_feats].set(x)

    kernel = _make_kan_kernel(len(fused_weights), knots, spline_order)

    grid = (B_pad // TB,)
    in_specs = [pl.BlockSpec((TB, in_pad), lambda b: (b, 0))] + [
        pl.BlockSpec(w.shape, lambda b: (0, 0)) for w in fused_weights
    ]
    out_specs = pl.BlockSpec((TB, out_pad), lambda b: (b, 0))

    # Explicit VMEM budget with headroom: bf16 weights (double-buffered by
    # default), double-buffered x/out tiles, plus elementwise temporaries.
    weight_bytes = sum(int(w.size) * 2 for w in fused_weights)
    tile_bytes = 2 * 4 * TB * (in_pad + out_pad)
    needed = 2 * weight_bytes + 2 * tile_bytes + 2 * ew_budget
    vmem_limit = int(min(max(needed, 32 * 2**20), 96 * 2**20))

    out_p = pl.pallas_call(
        kernel,
        out_shape=jax.ShapeDtypeStruct((B_pad, out_pad), jnp.float32),
        grid=grid,
        in_specs=in_specs,
        out_specs=out_specs,
        compiler_params=pltpu.CompilerParams(
            dimension_semantics=("parallel",),
            vmem_limit_bytes=vmem_limit),
    )(x_p, *fused_weights)
    return out_p[:B, :out_features]


# ----------------------------------------------------------------------------
# Parameter construction (deterministic, synthetic) in the fused bf16 layout
# ----------------------------------------------------------------------------
def init_kan_linear(key, in_features, out_features, in_pad, out_pad, knots,
                    spline_order=SPLINE_ORDER):
    k1, k2, k3 = jax.random.split(key, 3)
    C = len(knots) - 1 - spline_order       # grid_size + spline_order
    h = knots[1] - knots[0]                  # uniform knot spacing
    # Cox-de Boor normalization for uniform knots, folded into spline weights
    # in f32 BEFORE the bf16 cast (avoids compounding rounding).
    norm = 1.0 / (math.factorial(spline_order) * (h ** spline_order))

    base_weight = jax.random.normal(
        k1, (out_features, in_features), jnp.float32)
    base_weight = base_weight / jnp.sqrt(jnp.float32(in_features))

    spline_weight = 0.1 * jax.random.normal(
        k2, (out_features, in_features, C), jnp.float32)
    spline_scaler = 1.0 + 0.1 * jax.random.normal(
        k3, (out_features, in_features), jnp.float32)
    scaled_spline = spline_weight * spline_scaler[..., None] * norm   # (O,I,C)

    # Fused, lane-padded MXU layout matching the in-kernel slab ordering
    # [SiLU(x) (I_pad cols) | basis_c (I_pad cols) for c in 0..C-1]:
    #   rows s*in_pad + i for segment s, zero elsewhere (padded features and
    #   padded output columns contribute exactly zero).
    w = jnp.zeros(((C + 1) * in_pad, out_pad), jnp.float32)
    w = w.at[:in_features, :out_features].set(base_weight.T)
    for c in range(C):
        r0 = (c + 1) * in_pad
        w = w.at[r0:r0 + in_features, :out_features].set(scaled_spline[:, :, c].T)
    return w.astype(jnp.bfloat16)


def init_kan(key, layers_hidden, knots, spline_order=SPLINE_ORDER):
    pads = [_round_up(n, LANE) for n in layers_hidden]
    keys = jax.random.split(key, len(layers_hidden) - 1)
    return [
        init_kan_linear(keys[i], layers_hidden[i], layers_hidden[i + 1],
                        pads[i], pads[i + 1], knots, spline_order)
        for i in range(len(layers_hidden) - 1)
    ]


# ----------------------------------------------------------------------------
if __name__ == "__main__":
    batch = 2
    layers_hidden = [8, 32, 4]           # in_features=8, hidden=32, out=4

    knots = make_knots()
    key = jax.random.PRNGKey(0)
    kp, kx = jax.random.split(key)

    weights = init_kan(kp, layers_hidden, knots)
    x = jax.random.normal(kx, (batch, layers_hidden[0]), jnp.float32)

    fwd = jax.jit(functools.partial(
        kan_forward, knots=knots, spline_order=SPLINE_ORDER,
        out_features=layers_hidden[-1]))
    out = fwd(x, weights)
    jax.block_until_ready(out)

    assert out.shape == (batch, layers_hidden[-1])
    assert bool(jnp.all(jnp.isfinite(out)))
    print("KERNEL_OK")
</pallas_src>

<mosaic_0001>
module attributes {stable_mosaic.version = 11 : i64} {
  func.func @kernel(%arg0: i32, %arg1: memref<8x128xf32, #tpu.memory_space<vmem>>, %arg2: memref<1152x128xbf16, #tpu.memory_space<vmem>>, %arg3: memref<1152x128xbf16, #tpu.memory_space<vmem>>, %arg4: memref<8x128xf32, #tpu.memory_space<vmem>>) attributes {dimension_semantics = [#tpu.dimension_semantics<parallel>], iteration_bounds = array<i64: 1>, scalar_prefetch = 0 : i64, scratch_operands = 0 : i64, tpu.core_type = #tpu.core_type<tc>, window_params = [{transform_indices = @transform_0, window_bounds = array<i64: 8, 128>}, {pipeline_mode = #tpu.pipeline_mode<synchronous>, transform_indices = @transform_1, window_bounds = array<i64: 1152, 128>}, {pipeline_mode = #tpu.pipeline_mode<synchronous>, transform_indices = @transform_2, window_bounds = array<i64: 1152, 128>}, {transform_indices = @transform_3, window_bounds = array<i64: 8, 128>}]} {
    %c0 = arith.constant 0 : index
    %c0_0 = arith.constant 0 : index
    %0 = vector.load %arg1[%c0, %c0_0] : memref<8x128xf32, #tpu.memory_space<vmem>>, vector<8x128xf32>
    %1 = arith.negf %0 : vector<8x128xf32>
    %2 = math.exp %1 : vector<8x128xf32>
    %cst = arith.constant 1.000000e+00 : f32
    %3 = vector.broadcast %cst : f32 to vector<8x128xf32>
    %4 = arith.addf %3, %2 : vector<8x128xf32>
    %5 = arith.divf %3, %4 : vector<8x128xf32>
    %6 = arith.mulf %0, %5 : vector<8x128xf32>
    %cst_1 = arith.constant -2.200000e+00 : f32
    %7 = vector.broadcast %cst_1 : f32 to vector<8x128xf32>
    %8 = arith.subf %0, %7 : vector<8x128xf32>
    %cst_2 = arith.constant -1.800000e+00 : f32
    %9 = vector.broadcast %cst_2 : f32 to vector<8x128xf32>
    %10 = arith.subf %0, %9 : vector<8x128xf32>
    %cst_3 = arith.constant -1.400000e+00 : f32
    %11 = vector.broadcast %cst_3 : f32 to vector<8x128xf32>
    %12 = arith.subf %0, %11 : vector<8x128xf32>
    %cst_4 = arith.constant -1.000000e+00 : f32
    %13 = vector.broadcast %cst_4 : f32 to vector<8x128xf32>
    %14 = arith.subf %0, %13 : vector<8x128xf32>
    %cst_5 = arith.constant -6.000000e-01 : f32
    %15 = vector.broadcast %cst_5 : f32 to vector<8x128xf32>
    %16 = arith.subf %0, %15 : vector<8x128xf32>
    %cst_6 = arith.constant -2.000000e-01 : f32
    %17 = vector.broadcast %cst_6 : f32 to vector<8x128xf32>
    %18 = arith.subf %0, %17 : vector<8x128xf32>
    %cst_7 = arith.constant 2.000000e-01 : f32
    %19 = vector.broadcast %cst_7 : f32 to vector<8x128xf32>
    %20 = arith.subf %0, %19 : vector<8x128xf32>
    %cst_8 = arith.constant 6.000000e-01 : f32
    %21 = vector.broadcast %cst_8 : f32 to vector<8x128xf32>
    %22 = arith.subf %0, %21 : vector<8x128xf32>
    %cst_9 = arith.constant 1.000000e+00 : f32
    %23 = vector.broadcast %cst_9 : f32 to vector<8x128xf32>
    %24 = arith.subf %0, %23 : vector<8x128xf32>
    %cst_10 = arith.constant 1.400000e+00 : f32
    %25 = vector.broadcast %cst_10 : f32 to vector<8x128xf32>
    %26 = arith.subf %0, %25 : vector<8x128xf32>
    %cst_11 = arith.constant 1.800000e+00 : f32
    %27 = vector.broadcast %cst_11 : f32 to vector<8x128xf32>
    %28 = arith.subf %0, %27 : vector<8x128xf32>
    %cst_12 = arith.constant 2.200000e+00 : f32
    %29 = vector.broadcast %cst_12 : f32 to vector<8x128xf32>
    %30 = arith.subf %0, %29 : vector<8x128xf32>
    %cst_13 = arith.constant -2.200000e+00 : f32
    %31 = vector.broadcast %cst_13 : f32 to vector<8x128xf32>
    %32 = arith.cmpf oge, %0, %31 : vector<8x128xf32>
    %cst_14 = arith.constant -1.800000e+00 : f32
    %33 = vector.broadcast %cst_14 : f32 to vector<8x128xf32>
    %34 = arith.cmpf olt, %0, %33 : vector<8x128xf32>
    %35 = arith.andi %32, %34 : vector<8x128xi1>
    %cst_15 = arith.constant 1.000000e+00 : f32
    %cst_16 = arith.constant 0.000000e+00 : f32
    %36 = vector.broadcast %cst_15 : f32 to vector<8x128xf32>
    %37 = vector.broadcast %cst_16 : f32 to vector<8x128xf32>
    %38 = arith.select %35, %36, %37 : vector<8x128xi1>, vector<8x128xf32>
    %cst_17 = arith.constant -1.800000e+00 : f32
    %39 = vector.broadcast %cst_17 : f32 to vector<8x128xf32>
    %40 = arith.cmpf oge, %0, %39 : vector<8x128xf32>
    %cst_18 = arith.constant -1.400000e+00 : f32
    %41 = vector.broadcast %cst_18 : f32 to vector<8x128xf32>
    %42 = arith.cmpf olt, %0, %41 : vector<8x128xf32>
    %43 = arith.andi %40, %42 : vector<8x128xi1>
    %cst_19 = arith.constant 1.000000e+00 : f32
    %cst_20 = arith.constant 0.000000e+00 : f32
    %44 = vector.broadcast %cst_19 : f32 to vector<8x128xf32>
    %45 = vector.broadcast %cst_20 : f32 to vector<8x128xf32>
    %46 = arith.select %43, %44, %45 : vector<8x128xi1>, vector<8x128xf32>
    %cst_21 = arith.constant -1.400000e+00 : f32
    %47 = vector.broadcast %cst_21 : f32 to vector<8x128xf32>
    %48 = arith.cmpf oge, %0, %47 : vector<8x128xf32>
    %cst_22 = arith.constant -1.000000e+00 : f32
    %49 = vector.broadcast %cst_22 : f32 to vector<8x128xf32>
    %50 = arith.cmpf olt, %0, %49 : vector<8x128xf32>
    %51 = arith.andi %48, %50 : vector<8x128xi1>
    %cst_23 = arith.constant 1.000000e+00 : f32
    %cst_24 = arith.constant 0.000000e+00 : f32
    %52 = vector.broadcast %cst_23 : f32 to vector<8x128xf32>
    %53 = vector.broadcast %cst_24 : f32 to vector<8x128xf32>
    %54 = arith.select %51, %52, %53 : vector<8x128xi1>, vector<8x128xf32>
    %cst_25 = arith.constant -1.000000e+00 : f32
    %55 = vector.broadcast %cst_25 : f32 to vector<8x128xf32>
    %56 = arith.cmpf oge, %0, %55 : vector<8x128xf32>
    %cst_26 = arith.constant -6.000000e-01 : f32
    %57 = vector.broadcast %cst_26 : f32 to vector<8x128xf32>
    %58 = arith.cmpf olt, %0, %57 : vector<8x128xf32>
    %59 = arith.andi %56, %58 : vector<8x128xi1>
    %cst_27 = arith.constant 1.000000e+00 : f32
    %cst_28 = arith.constant 0.000000e+00 : f32
    %60 = vector.broadcast %cst_27 : f32 to vector<8x128xf32>
    %61 = vector.broadcast %cst_28 : f32 to vector<8x128xf32>
    %62 = arith.select %59, %60, %61 : vector<8x128xi1>, vector<8x128xf32>
    %cst_29 = arith.constant -6.000000e-01 : f32
    %63 = vector.broadcast %cst_29 : f32 to vector<8x128xf32>
    %64 = arith.cmpf oge, %0, %63 : vector<8x128xf32>
    %cst_30 = arith.constant -2.000000e-01 : f32
    %65 = vector.broadcast %cst_30 : f32 to vector<8x128xf32>
    %66 = arith.cmpf olt, %0, %65 : vector<8x128xf32>
    %67 = arith.andi %64, %66 : vector<8x128xi1>
    %cst_31 = arith.constant 1.000000e+00 : f32
    %cst_32 = arith.constant 0.000000e+00 : f32
    %68 = vector.broadcast %cst_31 : f32 to vector<8x128xf32>
    %69 = vector.broadcast %cst_32 : f32 to vector<8x128xf32>
    %70 = arith.select %67, %68, %69 : vector<8x128xi1>, vector<8x128xf32>
    %cst_33 = arith.constant -2.000000e-01 : f32
    %71 = vector.broadcast %cst_33 : f32 to vector<8x128xf32>
    %72 = arith.cmpf oge, %0, %71 : vector<8x128xf32>
    %cst_34 = arith.constant 2.000000e-01 : f32
    %73 = vector.broadcast %cst_34 : f32 to vector<8x128xf32>
    %74 = arith.cmpf olt, %0, %73 : vector<8x128xf32>
    %75 = arith.andi %72, %74 : vector<8x128xi1>
    %cst_35 = arith.constant 1.000000e+00 : f32
    %cst_36 = arith.constant 0.000000e+00 : f32
    %76 = vector.broadcast %cst_35 : f32 to vector<8x128xf32>
    %77 = vector.broadcast %cst_36 : f32 to vector<8x128xf32>
    %78 = arith.select %75, %76, %77 : vector<8x128xi1>, vector<8x128xf32>
    %cst_37 = arith.constant 2.000000e-01 : f32
    %79 = vector.broadcast %cst_37 : f32 to vector<8x128xf32>
    %80 = arith.cmpf oge, %0, %79 : vector<8x128xf32>
    %cst_38 = arith.constant 6.000000e-01 : f32
    %81 = vector.broadcast %cst_38 : f32 to vector<8x128xf32>
    %82 = arith.cmpf olt, %0, %81 : vector<8x128xf32>
    %83 = arith.andi %80, %82 : vector<8x128xi1>
    %cst_39 = arith.constant 1.000000e+00 : f32
    %cst_40 = arith.constant 0.000000e+00 : f32
    %84 = vector.broadcast %cst_39 : f32 to vector<8x128xf32>
    %85 = vector.broadcast %cst_40 : f32 to vector<8x128xf32>
    %86 = arith.select %83, %84, %85 : vector<8x128xi1>, vector<8x128xf32>
    %cst_41 = arith.constant 6.000000e-01 : f32
    %87 = vector.broadcast %cst_41 : f32 to vector<8x128xf32>
    %88 = arith.cmpf oge, %0, %87 : vector<8x128xf32>
    %cst_42 = arith.constant 1.000000e+00 : f32
    %89 = vector.broadcast %cst_42 : f32 to vector<8x128xf32>
    %90 = arith.cmpf olt, %0, %89 : vector<8x128xf32>
    %91 = arith.andi %88, %90 : vector<8x128xi1>
    %cst_43 = arith.constant 1.000000e+00 : f32
    %cst_44 = arith.constant 0.000000e+00 : f32
    %92 = vector.broadcast %cst_43 : f32 to vector<8x128xf32>
    %93 = vector.broadcast %cst_44 : f32 to vector<8x128xf32>
    %94 = arith.select %91, %92, %93 : vector<8x128xi1>, vector<8x128xf32>
    %cst_45 = arith.constant 1.000000e+00 : f32
    %95 = vector.broadcast %cst_45 : f32 to vector<8x128xf32>
    %96 = arith.cmpf oge, %0, %95 : vector<8x128xf32>
    %cst_46 = arith.constant 1.400000e+00 : f32
    %97 = vector.broadcast %cst_46 : f32 to vector<8x128xf32>
    %98 = arith.cmpf olt, %0, %97 : vector<8x128xf32>
    %99 = arith.andi %96, %98 : vector<8x128xi1>
    %cst_47 = arith.constant 1.000000e+00 : f32
    %cst_48 = arith.constant 0.000000e+00 : f32
    %100 = vector.broadcast %cst_47 : f32 to vector<8x128xf32>
    %101 = vector.broadcast %cst_48 : f32 to vector<8x128xf32>
    %102 = arith.select %99, %100, %101 : vector<8x128xi1>, vector<8x128xf32>
    %cst_49 = arith.constant 1.400000e+00 : f32
    %103 = vector.broadcast %cst_49 : f32 to vector<8x128xf32>
    %104 = arith.cmpf oge, %0, %103 : vector<8x128xf32>
    %cst_50 = arith.constant 1.800000e+00 : f32
    %105 = vector.broadcast %cst_50 : f32 to vector<8x128xf32>
    %106 = arith.cmpf olt, %0, %105 : vector<8x128xf32>
    %107 = arith.andi %104, %106 : vector<8x128xi1>
    %cst_51 = arith.constant 1.000000e+00 : f32
    %cst_52 = arith.constant 0.000000e+00 : f32
    %108 = vector.broadcast %cst_51 : f32 to vector<8x128xf32>
    %109 = vector.broadcast %cst_52 : f32 to vector<8x128xf32>
    %110 = arith.select %107, %108, %109 : vector<8x128xi1>, vector<8x128xf32>
    %cst_53 = arith.constant 1.800000e+00 : f32
    %111 = vector.broadcast %cst_53 : f32 to vector<8x128xf32>
    %112 = arith.cmpf oge, %0, %111 : vector<8x128xf32>
    %cst_54 = arith.constant 2.200000e+00 : f32
    %113 = vector.broadcast %cst_54 : f32 to vector<8x128xf32>
    %114 = arith.cmpf olt, %0, %113 : vector<8x128xf32>
    %115 = arith.andi %112, %114 : vector<8x128xi1>
    %cst_55 = arith.constant 1.000000e+00 : f32
    %cst_56 = arith.constant 0.000000e+00 : f32
    %116 = vector.broadcast %cst_55 : f32 to vector<8x128xf32>
    %117 = vector.broadcast %cst_56 : f32 to vector<8x128xf32>
    %118 = arith.select %115, %116, %117 : vector<8x128xi1>, vector<8x128xf32>
    %119 = arith.mulf %8, %38 : vector<8x128xf32>
    %120 = arith.mulf %12, %46 : vector<8x128xf32>
    %121 = arith.subf %119, %120 : vector<8x128xf32>
    %122 = arith.mulf %10, %46 : vector<8x128xf32>
    %123 = arith.mulf %14, %54 : vector<8x128xf32>
    %124 = arith.subf %122, %123 : vector<8x128xf32>
    %125 = arith.mulf %12, %54 : vector<8x128xf32>
    %126 = arith.mulf %16, %62 : vector<8x128xf32>
    %127 = arith.subf %125, %126 : vector<8x128xf32>
    %128 = arith.mulf %14, %62 : vector<8x128xf32>
    %129 = arith.mulf %18, %70 : vector<8x128xf32>
    %130 = arith.subf %128, %129 : vector<8x128xf32>
    %131 = arith.mulf %16, %70 : vector<8x128xf32>
    %132 = arith.mulf %20, %78 : vector<8x128xf32>
    %133 = arith.subf %131, %132 : vector<8x128xf32>
    %134 = arith.mulf %18, %78 : vector<8x128xf32>
    %135 = arith.mulf %22, %86 : vector<8x128xf32>
    %136 = arith.subf %134, %135 : vector<8x128xf32>
    %137 = arith.mulf %20, %86 : vector<8x128xf32>
    %138 = arith.mulf %24, %94 : vector<8x128xf32>
    %139 = arith.subf %137, %138 : vector<8x128xf32>
    %140 = arith.mulf %22, %94 : vector<8x128xf32>
    %141 = arith.mulf %26, %102 : vector<8x128xf32>
    %142 = arith.subf %140, %141 : vector<8x128xf32>
    %143 = arith.mulf %24, %102 : vector<8x128xf32>
    %144 = arith.mulf %28, %110 : vector<8x128xf32>
    %145 = arith.subf %143, %144 : vector<8x128xf32>
    %146 = arith.mulf %26, %110 : vector<8x128xf32>
    %147 = arith.mulf %30, %118 : vector<8x128xf32>
    %148 = arith.subf %146, %147 : vector<8x128xf32>
    %149 = arith.mulf %8, %121 : vector<8x128xf32>
    %150 = arith.mulf %14, %124 : vector<8x128xf32>
    %151 = arith.subf %149, %150 : vector<8x128xf32>
    %152 = arith.mulf %10, %124 : vector<8x128xf32>
    %153 = arith.mulf %16, %127 : vector<8x128xf32>
    %154 = arith.subf %152, %153 : vector<8x128xf32>
    %155 = arith.mulf %12, %127 : vector<8x128xf32>
    %156 = arith.mulf %18, %130 : vector<8x128xf32>
    %157 = arith.subf %155, %156 : vector<8x128xf32>
    %158 = arith.mulf %14, %130 : vector<8x128xf32>
    %159 = arith.mulf %20, %133 : vector<8x128xf32>
    %160 = arith.subf %158, %159 : vector<8x128xf32>
    %161 = arith.mulf %16, %133 : vector<8x128xf32>
    %162 = arith.mulf %22, %136 : vector<8x128xf32>
    %163 = arith.subf %161, %162 : vector<8x128xf32>
    %164 = arith.mulf %18, %136 : vector<8x128xf32>
    %165 = arith.mulf %24, %139 : vector<8x128xf32>
    %166 = arith.subf %164, %165 : vector<8x128xf32>
    %167 = arith.mulf %20, %139 : vector<8x128xf32>
    %168 = arith.mulf %26, %142 : vector<8x128xf32>
    %169 = arith.subf %167, %168 : vector<8x128xf32>
    %170 = arith.mulf %22, %142 : vector<8x128xf32>
    %171 = arith.mulf %28, %145 : vector<8x128xf32>
    %172 = arith.subf %170, %171 : vector<8x128xf32>
    %173 = arith.mulf %24, %145 : vector<8x128xf32>
    %174 = arith.mulf %30, %148 : vector<8x128xf32>
    %175 = arith.subf %173, %174 : vector<8x128xf32>
    %176 = arith.mulf %8, %151 : vector<8x128xf32>
    %177 = arith.mulf %16, %154 : vector<8x128xf32>
    %178 = arith.subf %176, %177 : vector<8x128xf32>
    %179 = arith.mulf %10, %154 : vector<8x128xf32>
    %180 = arith.mulf %18, %157 : vector<8x128xf32>
    %181 = arith.subf %179, %180 : vector<8x128xf32>
    %182 = arith.mulf %12, %157 : vector<8x128xf32>
    %183 = arith.mulf %20, %160 : vector<8x128xf32>
    %184 = arith.subf %182, %183 : vector<8x128xf32>
    %185 = arith.mulf %14, %160 : vector<8x128xf32>
    %186 = arith.mulf %22, %163 : vector<8x128xf32>
    %187 = arith.subf %185, %186 : vector<8x128xf32>
    %188 = arith.mulf %16, %163 : vector<8x128xf32>
    %189 = arith.mulf %24, %166 : vector<8x128xf32>
    %190 = arith.subf %188, %189 : vector<8x128xf32>
    %191 = arith.mulf %18, %166 : vector<8x128xf32>
    %192 = arith.mulf %26, %169 : vector<8x128xf32>
    %193 = arith.subf %191, %192 : vector<8x128xf32>
    %194 = arith.mulf %20, %169 : vector<8x128xf32>
    %195 = arith.mulf %28, %172 : vector<8x128xf32>
    %196 = arith.subf %194, %195 : vector<8x128xf32>
    %197 = arith.mulf %22, %172 : vector<8x128xf32>
    %198 = arith.mulf %30, %175 : vector<8x128xf32>
    %199 = arith.subf %197, %198 : vector<8x128xf32>
    %200 = tpu.concatenate %6, %178, %181, %184, %187, %190, %193, %196, %199 in 1 : vector<8x128xf32>, vector<8x128xf32>, vector<8x128xf32>, vector<8x128xf32>, vector<8x128xf32>, vector<8x128xf32>, vector<8x128xf32>, vector<8x128xf32>, vector<8x128xf32> -> vector<8x1152xf32>
    %201 = arith.truncf %200 : vector<8x1152xf32> to vector<8x1152xbf16>
    %c0_57 = arith.constant 0 : index
    %c0_58 = arith.constant 0 : index
    %202 = vector.load %arg2[%c0_57, %c0_58] : memref<1152x128xbf16, #tpu.memory_space<vmem>>, vector<1152x128xbf16>
    %cst_59 = arith.constant dense<0.000000e+00> : vector<8x128xf32>
    %203 = tpu.matmul %201, %202, %cst_59 {dimension_numbers = #tpu.dot_dimension_numbers<[1], [0], [0], [1], [0, 0, 1, 1], [], []>} : vector<8x1152xbf16>, vector<1152x128xbf16>, vector<8x128xf32> -> vector<8x128xf32>
    %204 = arith.negf %203 : vector<8x128xf32>
    %205 = math.exp %204 : vector<8x128xf32>
    %cst_60 = arith.constant 1.000000e+00 : f32
    %206 = vector.broadcast %cst_60 : f32 to vector<8x128xf32>
    %207 = arith.addf %206, %205 : vector<8x128xf32>
    %208 = arith.divf %206, %207 : vector<8x128xf32>
    %209 = arith.mulf %203, %208 : vector<8x128xf32>
    %cst_61 = arith.constant -2.200000e+00 : f32
    %210 = vector.broadcast %cst_61 : f32 to vector<8x128xf32>
    %211 = arith.subf %203, %210 : vector<8x128xf32>
    %cst_62 = arith.constant -1.800000e+00 : f32
    %212 = vector.broadcast %cst_62 : f32 to vector<8x128xf32>
    %213 = arith.subf %203, %212 : vector<8x128xf32>
    %cst_63 = arith.constant -1.400000e+00 : f32
    %214 = vector.broadcast %cst_63 : f32 to vector<8x128xf32>
    %215 = arith.subf %203, %214 : vector<8x128xf32>
    %cst_64 = arith.constant -1.000000e+00 : f32
    %216 = vector.broadcast %cst_64 : f32 to vector<8x128xf32>
    %217 = arith.subf %203, %216 : vector<8x128xf32>
    %cst_65 = arith.constant -6.000000e-01 : f32
    %218 = vector.broadcast %cst_65 : f32 to vector<8x128xf32>
    %219 = arith.subf %203, %218 : vector<8x128xf32>
    %cst_66 = arith.constant -2.000000e-01 : f32
    %220 = vector.broadcast %cst_66 : f32 to vector<8x128xf32>
    %221 = arith.subf %203, %220 : vector<8x128xf32>
    %cst_67 = arith.constant 2.000000e-01 : f32
    %222 = vector.broadcast %cst_67 : f32 to vector<8x128xf32>
    %223 = arith.subf %203, %222 : vector<8x128xf32>
    %cst_68 = arith.constant 6.000000e-01 : f32
    %224 = vector.broadcast %cst_68 : f32 to vector<8x128xf32>
    %225 = arith.subf %203, %224 : vector<8x128xf32>
    %cst_69 = arith.constant 1.000000e+00 : f32
    %226 = vector.broadcast %cst_69 : f32 to vector<8x128xf32>
    %227 = arith.subf %203, %226 : vector<8x128xf32>
    %cst_70 = arith.constant 1.400000e+00 : f32
    %228 = vector.broadcast %cst_70 : f32 to vector<8x128xf32>
    %229 = arith.subf %203, %228 : vector<8x128xf32>
    %cst_71 = arith.constant 1.800000e+00 : f32
    %230 = vector.broadcast %cst_71 : f32 to vector<8x128xf32>
    %231 = arith.subf %203, %230 : vector<8x128xf32>
    %cst_72 = arith.constant 2.200000e+00 : f32
    %232 = vector.broadcast %cst_72 : f32 to vector<8x128xf32>
    %233 = arith.subf %203, %232 : vector<8x128xf32>
    %cst_73 = arith.constant -2.200000e+00 : f32
    %234 = vector.broadcast %cst_73 : f32 to vector<8x128xf32>
    %235 = arith.cmpf oge, %203, %234 : vector<8x128xf32>
    %cst_74 = arith.constant -1.800000e+00 : f32
    %236 = vector.broadcast %cst_74 : f32 to vector<8x128xf32>
    %237 = arith.cmpf olt, %203, %236 : vector<8x128xf32>
    %238 = arith.andi %235, %237 : vector<8x128xi1>
    %cst_75 = arith.constant 1.000000e+00 : f32
    %cst_76 = arith.constant 0.000000e+00 : f32
    %239 = vector.broadcast %cst_75 : f32 to vector<8x128xf32>
    %240 = vector.broadcast %cst_76 : f32 to vector<8x128xf32>
    %241 = arith.select %238, %239, %240 : vector<8x128xi1>, vector<8x128xf32>
    %cst_77 = arith.constant -1.800000e+00 : f32
    %242 = vector.broadcast %cst_77 : f32 to vector<8x128xf32>
    %243 = arith.cmpf oge, %203, %242 : vector<8x128xf32>
    %cst_78 = arith.constant -1.400000e+00 : f32
    %244 = vector.broadcast %cst_78 : f32 to vector<8x128xf32>
    %245 = arith.cmpf olt, %203, %244 : vector<8x128xf32>
    %246 = arith.andi %243, %245 : vector<8x128xi1>
    %cst_79 = arith.constant 1.000000e+00 : f32
    %cst_80 = arith.constant 0.000000e+00 : f32
    %247 = vector.broadcast %cst_79 : f32 to vector<8x128xf32>
    %248 = vector.broadcast %cst_80 : f32 to vector<8x128xf32>
    %249 = arith.select %246, %247, %248 : vector<8x128xi1>, vector<8x128xf32>
    %cst_81 = arith.constant -1.400000e+00 : f32
    %250 = vector.broadcast %cst_81 : f32 to vector<8x128xf32>
    %251 = arith.cmpf oge, %203, %250 : vector<8x128xf32>
    %cst_82 = arith.constant -1.000000e+00 : f32
    %252 = vector.broadcast %cst_82 : f32 to vector<8x128xf32>
    %253 = arith.cmpf olt, %203, %252 : vector<8x128xf32>
    %254 = arith.andi %251, %253 : vector<8x128xi1>
    %cst_83 = arith.constant 1.000000e+00 : f32
    %cst_84 = arith.constant 0.000000e+00 : f32
    %255 = vector.broadcast %cst_83 : f32 to vector<8x128xf32>
    %256 = vector.broadcast %cst_84 : f32 to vector<8x128xf32>
    %257 = arith.select %254, %255, %256 : vector<8x128xi1>, vector<8x128xf32>
    %cst_85 = arith.constant -1.000000e+00 : f32
    %258 = vector.broadcast %cst_85 : f32 to vector<8x128xf32>
    %259 = arith.cmpf oge, %203, %258 : vector<8x128xf32>
    %cst_86 = arith.constant -6.000000e-01 : f32
    %260 = vector.broadcast %cst_86 : f32 to vector<8x128xf32>
    %261 = arith.cmpf olt, %203, %260 : vector<8x128xf32>
    %262 = arith.andi %259, %261 : vector<8x128xi1>
    %cst_87 = arith.constant 1.000000e+00 : f32
    %cst_88 = arith.constant 0.000000e+00 : f32
    %263 = vector.broadcast %cst_87 : f32 to vector<8x128xf32>
    %264 = vector.broadcast %cst_88 : f32 to vector<8x128xf32>
    %265 = arith.select %262, %263, %264 : vector<8x128xi1>, vector<8x128xf32>
    %cst_89 = arith.constant -6.000000e-01 : f32
    %266 = vector.broadcast %cst_89 : f32 to vector<8x128xf32>
    %267 = arith.cmpf oge, %203, %266 : vector<8x128xf32>
    %cst_90 = arith.constant -2.000000e-01 : f32
    %268 = vector.broadcast %cst_90 : f32 to vector<8x128xf32>
    %269 = arith.cmpf olt, %203, %268 : vector<8x128xf32>
    %270 = arith.andi %267, %269 : vector<8x128xi1>
    %cst_91 = arith.constant 1.000000e+00 : f32
    %cst_92 = arith.constant 0.000000e+00 : f32
    %271 = vector.broadcast %cst_91 : f32 to vector<8x128xf32>
    %272 = vector.broadcast %cst_92 : f32 to vector<8x128xf32>
    %273 = arith.select %270, %271, %272 : vector<8x128xi1>, vector<8x128xf32>
    %cst_93 = arith.constant -2.000000e-01 : f32
    %274 = vector.broadcast %cst_93 : f32 to vector<8x128xf32>
    %275 = arith.cmpf oge, %203, %274 : vector<8x128xf32>
    %cst_94 = arith.constant 2.000000e-01 : f32
    %276 = vector.broadcast %cst_94 : f32 to vector<8x128xf32>
    %277 = arith.cmpf olt, %203, %276 : vector<8x128xf32>
    %278 = arith.andi %275, %277 : vector<8x128xi1>
    %cst_95 = arith.constant 1.000000e+00 : f32
    %cst_96 = arith.constant 0.000000e+00 : f32
    %279 = vector.broadcast %cst_95 : f32 to vector<8x128xf32>
    %280 = vector.broadcast %cst_96 : f32 to vector<8x128xf32>
    %281 = arith.select %278, %279, %280 : vector<8x128xi1>, vector<8x128xf32>
    %cst_97 = arith.constant 2.000000e-01 : f32
    %282 = vector.broadcast %cst_97 : f32 to vector<8x128xf32>
    %283 = arith.cmpf oge, %203, %282 : vector<8x128xf32>
    %cst_98 = arith.constant 6.000000e-01 : f32
    %284 = vector.broadcast %cst_98 : f32 to vector<8x128xf32>
    %285 = arith.cmpf olt, %203, %284 : vector<8x128xf32>
    %286 = arith.andi %283, %285 : vector<8x128xi1>
    %cst_99 = arith.constant 1.000000e+00 : f32
    %cst_100 = arith.constant 0.000000e+00 : f32
    %287 = vector.broadcast %cst_99 : f32 to vector<8x128xf32>
    %288 = vector.broadcast %cst_100 : f32 to vector<8x128xf32>
    %289 = arith.select %286, %287, %288 : vector<8x128xi1>, vector<8x128xf32>
    %cst_101 = arith.constant 6.000000e-01 : f32
    %290 = vector.broadcast %cst_101 : f32 to vector<8x128xf32>
    %291 = arith.cmpf oge, %203, %290 : vector<8x128xf32>
    %cst_102 = arith.constant 1.000000e+00 : f32
    %292 = vector.broadcast %cst_102 : f32 to vector<8x128xf32>
    %293 = arith.cmpf olt, %203, %292 : vector<8x128xf32>
    %294 = arith.andi %291, %293 : vector<8x128xi1>
    %cst_103 = arith.constant 1.000000e+00 : f32
    %cst_104 = arith.constant 0.000000e+00 : f32
    %295 = vector.broadcast %cst_103 : f32 to vector<8x128xf32>
    %296 = vector.broadcast %cst_104 : f32 to vector<8x128xf32>
    %297 = arith.select %294, %295, %296 : vector<8x128xi1>, vector<8x128xf32>
    %cst_105 = arith.constant 1.000000e+00 : f32
    %298 = vector.broadcast %cst_105 : f32 to vector<8x128xf32>
    %299 = arith.cmpf oge, %203, %298 : vector<8x128xf32>
    %cst_106 = arith.constant 1.400000e+00 : f32
    %300 = vector.broadcast %cst_106 : f32 to vector<8x128xf32>
    %301 = arith.cmpf olt, %203, %300 : vector<8x128xf32>
    %302 = arith.andi %299, %301 : vector<8x128xi1>
    %cst_107 = arith.constant 1.000000e+00 : f32
    %cst_108 = arith.constant 0.000000e+00 : f32
    %303 = vector.broadcast %cst_107 : f32 to vector<8x128xf32>
    %304 = vector.broadcast %cst_108 : f32 to vector<8x128xf32>
    %305 = arith.select %302, %303, %304 : vector<8x128xi1>, vector<8x128xf32>
    %cst_109 = arith.constant 1.400000e+00 : f32
    %306 = vector.broadcast %cst_109 : f32 to vector<8x128xf32>
    %307 = arith.cmpf oge, %203, %306 : vector<8x128xf32>
    %cst_110 = arith.constant 1.800000e+00 : f32
    %308 = vector.broadcast %cst_110 : f32 to vector<8x128xf32>
    %309 = arith.cmpf olt, %203, %308 : vector<8x128xf32>
    %310 = arith.andi %307, %309 : vector<8x128xi1>
    %cst_111 = arith.constant 1.000000e+00 : f32
    %cst_112 = arith.constant 0.000000e+00 : f32
    %311 = vector.broadcast %cst_111 : f32 to vector<8x128xf32>
    %312 = vector.broadcast %cst_112 : f32 to vector<8x128xf32>
    %313 = arith.select %310, %311, %312 : vector<8x128xi1>, vector<8x128xf32>
    %cst_113 = arith.constant 1.800000e+00 : f32
    %314 = vector.broadcast %cst_113 : f32 to vector<8x128xf32>
    %315 = arith.cmpf oge, %203, %314 : vector<8x128xf32>
    %cst_114 = arith.constant 2.200000e+00 : f32
    %316 = vector.broadcast %cst_114 : f32 to vector<8x128xf32>
    %317 = arith.cmpf olt, %203, %316 : vector<8x128xf32>
    %318 = arith.andi %315, %317 : vector<8x128xi1>
    %cst_115 = arith.constant 1.000000e+00 : f32
    %cst_116 = arith.constant 0.000000e+00 : f32
    %319 = vector.broadcast %cst_115 : f32 to vector<8x128xf32>
    %320 = vector.broadcast %cst_116 : f32 to vector<8x128xf32>
    %321 = arith.select %318, %319, %320 : vector<8x128xi1>, vector<8x128xf32>
    %322 = arith.mulf %211, %241 : vector<8x128xf32>
    %323 = arith.mulf %215, %249 : vector<8x128xf32>
    %324 = arith.subf %322, %323 : vector<8x128xf32>
    %325 = arith.mulf %213, %249 : vector<8x128xf32>
    %326 = arith.mulf %217, %257 : vector<8x128xf32>
    %327 = arith.subf %325, %326 : vector<8x128xf32>
    %328 = arith.mulf %215, %257 : vector<8x128xf32>
    %329 = arith.mulf %219, %265 : vector<8x128xf32>
    %330 = arith.subf %328, %329 : vector<8x128xf32>
    %331 = arith.mulf %217, %265 : vector<8x128xf32>
    %332 = arith.mulf %221, %273 : vector<8x128xf32>
    %333 = arith.subf %331, %332 : vector<8x128xf32>
    %334 = arith.mulf %219, %273 : vector<8x128xf32>
    %335 = arith.mulf %223, %281 : vector<8x128xf32>
    %336 = arith.subf %334, %335 : vector<8x128xf32>
    %337 = arith.mulf %221, %281 : vector<8x128xf32>
    %338 = arith.mulf %225, %289 : vector<8x128xf32>
    %339 = arith.subf %337, %338 : vector<8x128xf32>
    %340 = arith.mulf %223, %289 : vector<8x128xf32>
    %341 = arith.mulf %227, %297 : vector<8x128xf32>
    %342 = arith.subf %340, %341 : vector<8x128xf32>
    %343 = arith.mulf %225, %297 : vector<8x128xf32>
    %344 = arith.mulf %229, %305 : vector<8x128xf32>
    %345 = arith.subf %343, %344 : vector<8x128xf32>
    %346 = arith.mulf %227, %305 : vector<8x128xf32>
    %347 = arith.mulf %231, %313 : vector<8x128xf32>
    %348 = arith.subf %346, %347 : vector<8x128xf32>
    %349 = arith.mulf %229, %313 : vector<8x128xf32>
    %350 = arith.mulf %233, %321 : vector<8x128xf32>
    %351 = arith.subf %349, %350 : vector<8x128xf32>
    %352 = arith.mulf %211, %324 : vector<8x128xf32>
    %353 = arith.mulf %217, %327 : vector<8x128xf32>
    %354 = arith.subf %352, %353 : vector<8x128xf32>
    %355 = arith.mulf %213, %327 : vector<8x128xf32>
    %356 = arith.mulf %219, %330 : vector<8x128xf32>
    %357 = arith.subf %355, %356 : vector<8x128xf32>
    %358 = arith.mulf %215, %330 : vector<8x128xf32>
    %359 = arith.mulf %221, %333 : vector<8x128xf32>
    %360 = arith.subf %358, %359 : vector<8x128xf32>
    %361 = arith.mulf %217, %333 : vector<8x128xf32>
    %362 = arith.mulf %223, %336 : vector<8x128xf32>
    %363 = arith.subf %361, %362 : vector<8x128xf32>
    %364 = arith.mulf %219, %336 : vector<8x128xf32>
    %365 = arith.mulf %225, %339 : vector<8x128xf32>
    %366 = arith.subf %364, %365 : vector<8x128xf32>
    %367 = arith.mulf %221, %339 : vector<8x128xf32>
    %368 = arith.mulf %227, %342 : vector<8x128xf32>
    %369 = arith.subf %367, %368 : vector<8x128xf32>
    %370 = arith.mulf %223, %342 : vector<8x128xf32>
    %371 = arith.mulf %229, %345 : vector<8x128xf32>
    %372 = arith.subf %370, %371 : vector<8x128xf32>
    %373 = arith.mulf %225, %345 : vector<8x128xf32>
    %374 = arith.mulf %231, %348 : vector<8x128xf32>
    %375 = arith.subf %373, %374 : vector<8x128xf32>
    %376 = arith.mulf %227, %348 : vector<8x128xf32>
    %377 = arith.mulf %233, %351 : vector<8x128xf32>
    %378 = arith.subf %376, %377 : vector<8x128xf32>
    %379 = arith.mulf %211, %354 : vector<8x128xf32>
    %380 = arith.mulf %219, %357 : vector<8x128xf32>
    %381 = arith.subf %379, %380 : vector<8x128xf32>
    %382 = arith.mulf %213, %357 : vector<8x128xf32>
    %383 = arith.mulf %221, %360 : vector<8x128xf32>
    %384 = arith.subf %382, %383 : vector<8x128xf32>
    %385 = arith.mulf %215, %360 : vector<8x128xf32>
    %386 = arith.mulf %223, %363 : vector<8x128xf32>
    %387 = arith.subf %385, %386 : vector<8x128xf32>
    %388 = arith.mulf %217, %363 : vector<8x128xf32>
    %389 = arith.mulf %225, %366 : vector<8x128xf32>
    %390 = arith.subf %388, %389 : vector<8x128xf32>
    %391 = arith.mulf %219, %366 : vector<8x128xf32>
    %392 = arith.mulf %227, %369 : vector<8x128xf32>
    %393 = arith.subf %391, %392 : vector<8x128xf32>
    %394 = arith.mulf %221, %369 : vector<8x128xf32>
    %395 = arith.mulf %229, %372 : vector<8x128xf32>
    %396 = arith.subf %394, %395 : vector<8x128xf32>
    %397 = arith.mulf %223, %372 : vector<8x128xf32>
    %398 = arith.mulf %231, %375 : vector<8x128xf32>
    %399 = arith.subf %397, %398 : vector<8x128xf32>
    %400 = arith.mulf %225, %375 : vector<8x128xf32>
    %401 = arith.mulf %233, %378 : vector<8x128xf32>
    %402 = arith.subf %400, %401 : vector<8x128xf32>
    %403 = tpu.concatenate %209, %381, %384, %387, %390, %393, %396, %399, %402 in 1 : vector<8x128xf32>, vector<8x128xf32>, vector<8x128xf32>, vector<8x128xf32>, vector<8x128xf32>, vector<8x128xf32>, vector<8x128xf32>, vector<8x128xf32>, vector<8x128xf32> -> vector<8x1152xf32>
    %404 = arith.truncf %403 : vector<8x1152xf32> to vector<8x1152xbf16>
    %c0_117 = arith.constant 0 : index
    %c0_118 = arith.constant 0 : index
    %405 = vector.load %arg3[%c0_117, %c0_118] : memref<1152x128xbf16, #tpu.memory_space<vmem>>, vector<1152x128xbf16>
    %cst_119 = arith.constant dense<0.000000e+00> : vector<8x128xf32>
    %406 = tpu.matmul %404, %405, %cst_119 {dimension_numbers = #tpu.dot_dimension_numbers<[1], [0], [0], [1], [0, 0, 1, 1], [], []>} : vector<8x1152xbf16>, vector<1152x128xbf16>, vector<8x128xf32> -> vector<8x128xf32>
    %c0_120 = arith.constant 0 : index
    %c0_121 = arith.constant 0 : index
    %407 = vector.load %arg4[%c0_120, %c0_121] : memref<8x128xf32, #tpu.memory_space<vmem>>, vector<8x128xf32>
    tpu.vector_store %arg4[%c0_120, %c0_121], %406 {strides = array<i32>} : memref<8x128xf32, #tpu.memory_space<vmem>>, vector<8x128xf32>,
    return
  }
  func.func @transform_0(%arg0: i32) -> (i32, i32) {
    %c0_i32 = arith.constant 0 : i32
    %c0_i32_0 = arith.constant 0 : i32
    return %arg0, %c0_i32 : i32, i32
  }
  func.func @transform_1(%arg0: i32) -> (i32, i32) {
    %c0_i32 = arith.constant 0 : i32
    %c0_i32_0 = arith.constant 0 : i32
    %c0_i32_1 = arith.constant 0 : i32
    return %c0_i32, %c0_i32_0 : i32, i32
  }
  func.func @transform_2(%arg0: i32) -> (i32, i32) {
    %c0_i32 = arith.constant 0 : i32
    %c0_i32_0 = arith.constant 0 : i32
    %c0_i32_1 = arith.constant 0 : i32
    return %c0_i32, %c0_i32_0 : i32, i32
  }
  func.func @transform_3(%arg0: i32) -> (i32, i32) {
    %c0_i32 = arith.constant 0 : i32
    %c0_i32_0 = arith.constant 0 : i32
    return %arg0, %c0_i32 : i32, i32
  }
}

</mosaic_0001>

<llo_original>
// kernel: kan_forward.1
$region0: #{kan_forward.1}
  #allocation0 [shape = 'u32[]', space=smem, size = 0x4, offset = 0x4, fixed_abs, tag = 'smem constant byte address 0x4 - core index']
  #allocation1 [shape = 'u32[144,128]{1,0:T(1,128)}', space=vmem, size = 0x12000, scoped, tag = 'internal scratch']
  %s0 = inlined_call_operand.vmem [shape: f32[8,128], index: 0, kind: input, shape index: {}]
  %s1 = inlined_call_operand.hbm [shape: bf16[1152,128], index: 1, kind: input, shape index: {}]
  %s2 = inlined_call_operand.hbm [shape: bf16[1152,128], index: 2, kind: input, shape index: {}]
  %s3 = inlined_call_operand.vmem [shape: f32[8,128], index: 3, kind: output, shape index: {}]
  %s4 = sld [smem:[#allocation0]]
  $region30: #{kan_forward.1} parent=0
    _
  %s6 = ssub.s32 1, %s4
  %s7 = scalar_select 0, %s6, %s4
  $region1: #{kan_forward.1} parent=0
    #allocation2 [shape = 'u8[294912]{0}', space=vmem, size = 0x48000, scoped, tag = 'input window, operand 1, single buffered']
    #allocation3 [shape = 's32[1]{0}', space=sflag, size = 0x4, scoped, tag = 'scoped memory for kan_forward.1']
    #allocation4 [shape = 'u8[294912]{0}', space=vmem, size = 0x48000, scoped, tag = 'input window, operand 2, single buffered']
    #allocation5 [shape = 's32[1]{0}', space=sflag, size = 0x4, scoped, tag = 'scoped memory for kan_forward.1']
    %8 = vsyncpa [#allocation3], 0
    %9 = vsyncpa [#allocation5], 0
    // Predicated region
    $region2: #{kan_forward.1} parent=1 // pred_check
      _
    $region3: #{kan_forward.1} parent=1 // pred_check_branch
      %11 = sbr.rel (0) target = $region5
    $region4: #{kan_forward.1} parent=1 // pred_region
      _
    $region5: #{kan_forward.1} parent=1 // pred_fallthru
      _
    // Predicated region
    $region6: #{kan_forward.1} parent=1 // pred_check
      _
    $region7: #{kan_forward.1} parent=1 // pred_check_branch
      %13 = sbr.rel (0) target = $region9
    $region8: #{kan_forward.1} parent=1 // pred_region
      %s15 = ssub.s32 9216, 9216
      %16 = vsyncadd [#allocation3], %s15
      %s17 = sshll.u32 [#allocation2], 4
      %s18 = int_to_ptr.vmem [resolvable:$true] %s17
      %23 = dma.hbm_to_vmem [thread:$0]  %s1, 9216, %s18, [#allocation3], 64, 64, 4
    $region9: #{kan_forward.1} parent=1 // pred_fallthru
      _
    // Predicated region
    $region10: #{kan_forward.1} parent=1 // pred_check
      _
    $region11: #{kan_forward.1} parent=1 // pred_check_branch
      %25 = sbr.rel (0) target = $region13
    $region12: #{kan_forward.1} parent=1 // pred_region
      %s27 = ssub.s32 9216, 9216
      %28 = vsyncadd [#allocation5], %s27
      %s29 = sshll.u32 [#allocation4], 4
      %s30 = int_to_ptr.vmem [resolvable:$true] %s29
      %35 = dma.hbm_to_vmem [thread:$0]  %s2, 9216, %s30, [#allocation5], 64, 64, 4
    $region13: #{kan_forward.1} parent=1 // pred_fallthru
      _
    // Predicated region
    $region14: #{kan_forward.1} parent=1 // pred_check
      _
    $region15: #{kan_forward.1} parent=1 // pred_check_branch
      %37 = sbr.rel (0) target = $region17
    $region16: #{kan_forward.1} parent=1 // pred_region
      %38 = dma.done [#allocation3], 9216
    $region17: #{kan_forward.1} parent=1 // pred_fallthru
      _
    // Predicated region
    $region18: #{kan_forward.1} parent=1 // pred_check
      _
    $region19: #{kan_forward.1} parent=1 // pred_check_branch
      %40 = sbr.rel (0) target = $region21
    $region20: #{kan_forward.1} parent=1 // pred_region
      %41 = dma.done [#allocation5], 9216
    $region21: #{kan_forward.1} parent=1 // pred_fallthru
      _
    %v43 = vld [vmem:[%s0] sm:$0xff]
    %v44 = vxor.u32 %v43, 2147483648
    %v45 = vmul.f32 %v44, 1.442695
    %v46 = vpow.pop %v45
    %v47 = vadd.f32 %v46, 1.0
    %v48 = vrcp.pop %v47
    %v49 = vmul.f32 1.0, %v48
    %v50 = vmul.f32 %v43, %v49
    %v51 = vsub.f32 %v43, -2.2
    %v52 = vsub.f32 %v43, -1.8
    %v53 = vsub.f32 %v43, -1.4
    %v54 = vsub.f32 %v43, -1.0
    %v55 = vsub.f32 %v43, -0.6
    %v56 = vsub.f32 %v43, -0.2
    %v57 = vsub.f32 %v43, 0.2
    %v58 = vsub.f32 %v43, 0.6
    %v59 = vsub.f32 %v43, 1.0
    %v60 = vsub.f32 %v43, 1.4
    %v61 = vsub.f32 %v43, 1.8
    %v62 = vsub.f32 %v43, 2.2
    %vm63 = vcmp.ge.f32.partialorder %v43, -2.2
    %vm64 = vcmp.lt.f32.partialorder %v43, -1.8
    %vm65 = vmand %vm63, %vm64
    %v66 = vsel %vm65, 1.0, 0.0
    %vm67 = vcmp.ge.f32.partialorder %v43, -1.8
    %vm68 = vcmp.lt.f32.partialorder %v43, -1.4
    %vm69 = vmand %vm67, %vm68
    %v70 = vsel %vm69, 1.0, 0.0
    %vm71 = vcmp.ge.f32.partialorder %v43, -1.4
    %vm72 = vcmp.lt.f32.partialorder %v43, -1.0
    %vm73 = vmand %vm71, %vm72
    %v74 = vsel %vm73, 1.0, 0.0
    %vm75 = vcmp.ge.f32.partialorder %v43, -1.0
    %vm76 = vcmp.lt.f32.partialorder %v43, -0.6
    %vm77 = vmand %vm75, %vm76
    %v78 = vsel %vm77, 1.0, 0.0
    %vm79 = vcmp.ge.f32.partialorder %v43, -0.6
    %vm80 = vcmp.lt.f32.partialorder %v43, -0.2
    %vm81 = vmand %vm79, %vm80
    %v82 = vsel %vm81, 1.0, 0.0
    %vm83 = vcmp.ge.f32.partialorder %v43, -0.2
    %vm84 = vcmp.lt.f32.partialorder %v43, 0.2
    %vm85 = vmand %vm83, %vm84
    %v86 = vsel %vm85, 1.0, 0.0
    %vm87 = vcmp.ge.f32.partialorder %v43, 0.2
    %vm88 = vcmp.lt.f32.partialorder %v43, 0.6
    %vm89 = vmand %vm87, %vm88
    %v90 = vsel %vm89, 1.0, 0.0
    %vm91 = vcmp.ge.f32.partialorder %v43, 0.6
    %vm92 = vcmp.lt.f32.partialorder %v43, 1.0
    %vm93 = vmand %vm91, %vm92
    %v94 = vsel %vm93, 1.0, 0.0
    %vm95 = vcmp.ge.f32.partialorder %v43, 1.0
    %vm96 = vcmp.lt.f32.partialorder %v43, 1.4
    %vm97 = vmand %vm95, %vm96
    %v98 = vsel %vm97, 1.0, 0.0
    %vm99 = vcmp.ge.f32.partialorder %v43, 1.4
    %vm100 = vcmp.lt.f32.partialorder %v43, 1.8
    %vm101 = vmand %vm99, %vm100
    %v102 = vsel %vm101, 1.0, 0.0
    %vm103 = vcmp.ge.f32.partialorder %v43, 1.8
    %vm104 = vcmp.lt.f32.partialorder %v43, 2.2
    %vm105 = vmand %vm103, %vm104
    %v106 = vsel %vm105, 1.0, 0.0
    %v107 = vmul.f32 %v51, %v66
    %v108 = vmul.f32 %v53, %v70
    %v109 = vsub.f32 %v107, %v108
    %v110 = vmul.f32 %v52, %v70
    %v111 = vmul.f32 %v54, %v74
    %v112 = vsub.f32 %v110, %v111
    %v113 = vmul.f32 %v53, %v74
    %v114 = vmul.f32 %v55, %v78
    %v115 = vsub.f32 %v113, %v114
    %v116 = vmul.f32 %v54, %v78
    %v117 = vmul.f32 %v56, %v82
    %v118 = vsub.f32 %v116, %v117
    %v119 = vmul.f32 %v55, %v82
    %v120 = vmul.f32 %v57, %v86
    %v121 = vsub.f32 %v119, %v120
    %v122 = vmul.f32 %v56, %v86
    %v123 = vmul.f32 %v58, %v90
    %v124 = vsub.f32 %v122, %v123
    %v125 = vmul.f32 %v57, %v90
    %v126 = vmul.f32 %v59, %v94
    %v127 = vsub.f32 %v125, %v126
    %v128 = vmul.f32 %v58, %v94
    %v129 = vmul.f32 %v60, %v98
    %v130 = vsub.f32 %v128, %v129
    %v131 = vmul.f32 %v59, %v98
    %v132 = vmul.f32 %v61, %v102
    %v133 = vsub.f32 %v131, %v132
    %v134 = vmul.f32 %v60, %v102
    %v135 = vmul.f32 %v62, %v106
    %v136 = vsub.f32 %v134, %v135
    %v137 = vmul.f32 %v51, %v109
    %v138 = vmul.f32 %v54, %v112
    %v139 = vsub.f32 %v137, %v138
    %v140 = vmul.f32 %v52, %v112
    %v141 = vmul.f32 %v55, %v115
    %v142 = vsub.f32 %v140, %v141
    %v143 = vmul.f32 %v53, %v115
    %v144 = vmul.f32 %v56, %v118
    %v145 = vsub.f32 %v143, %v144
    %v146 = vmul.f32 %v54, %v118
    %v147 = vmul.f32 %v57, %v121
    %v148 = vsub.f32 %v146, %v147
    %v149 = vmul.f32 %v55, %v121
    %v150 = vmul.f32 %v58, %v124
    %v151 = vsub.f32 %v149, %v150
    %v152 = vmul.f32 %v56, %v124
    %v153 = vmul.f32 %v59, %v127
    %v154 = vsub.f32 %v152, %v153
    %v155 = vmul.f32 %v57, %v127
    %v156 = vmul.f32 %v60, %v130
    %v157 = vsub.f32 %v155, %v156
    %v158 = vmul.f32 %v58, %v130
    %v159 = vmul.f32 %v61, %v133
    %v160 = vsub.f32 %v158, %v159
    %v161 = vmul.f32 %v59, %v133
    %v162 = vmul.f32 %v62, %v136
    %v163 = vsub.f32 %v161, %v162
    %v164 = vmul.f32 %v51, %v139
    %v165 = vmul.f32 %v55, %v142
    %v166 = vsub.f32 %v164, %v165
    %v167 = vmul.f32 %v52, %v142
    %v168 = vmul.f32 %v56, %v145
    %v169 = vsub.f32 %v167, %v168
    %v170 = vmul.f32 %v53, %v145
    %v171 = vmul.f32 %v57, %v148
    %v172 = vsub.f32 %v170, %v171
    %v173 = vmul.f32 %v54, %v148
    %v174 = vmul.f32 %v58, %v151
    %v175 = vsub.f32 %v173, %v174
    %v176 = vmul.f32 %v55, %v151
    %v177 = vmul.f32 %v59, %v154
    %v178 = vsub.f32 %v176, %v177
    %v179 = vmul.f32 %v56, %v154
    %v180 = vmul.f32 %v60, %v157
    %v181 = vsub.f32 %v179, %v180
    %v182 = vmul.f32 %v57, %v157
    %v183 = vmul.f32 %v61, %v160
    %v184 = vsub.f32 %v182, %v183
    %v185 = vmul.f32 %v58, %v160
    %v186 = vmul.f32 %v62, %v163
    %v187 = vsub.f32 %v185, %v186
    %v188 = vpack.c.bf16 %v50, %v50
    %v189 = vpack.c.bf16 %v166, %v166
    %v190 = vpack.c.bf16 %v169, %v169
    %v191 = vpack.c.bf16 %v172, %v172
    %v192 = vpack.c.bf16 %v175, %v175
    %v193 = vpack.c.bf16 %v178, %v178
    %v194 = vpack.c.bf16 %v181, %v181
    %v195 = vpack.c.bf16 %v184, %v184
    %v196 = vpack.c.bf16 %v187, %v187
    %v197 = vld [vmem:[#allocation2] sm:$0xf]
    %v198 = vld [vmem:[#allocation2 + $0x4] sm:$0xf]
    %v199 = vld [vmem:[#allocation2 + $0x8] sm:$0xf]
    %v200 = vld [vmem:[#allocation2 + $0xc] sm:$0xf]
    %v201 = vld [vmem:[#allocation2 + $0x10] sm:$0xf]
    %v202 = vld [vmem:[#allocation2 + $0x14] sm:$0xf]
    %v203 = vld [vmem:[#allocation2 + $0x18] sm:$0xf]
    %v204 = vld [vmem:[#allocation2 + $0x1c] sm:$0xf]
    %v205 = vld [vmem:[#allocation2 + $0x20] sm:$0xf]
    %v206 = vld [vmem:[#allocation2 + $0x24] sm:$0xf]
    %v207 = vld [vmem:[#allocation2 + $0x28] sm:$0xf]
    %v208 = vld [vmem:[#allocation2 + $0x2c] sm:$0xf]
    %v209 = vld [vmem:[#allocation2 + $0x30] sm:$0xf]
    %v210 = vld [vmem:[#allocation2 + $0x34] sm:$0xf]
    %v211 = vld [vmem:[#allocation2 + $0x38] sm:$0xf]
    %v212 = vld [vmem:[#allocation2 + $0x3c] sm:$0xf]
    %v213 = vld [vmem:[#allocation2 + $0x40] sm:$0xf]
    %v214 = vld [vmem:[#allocation2 + $0x44] sm:$0xf]
    %v215 = vld [vmem:[#allocation2 + $0x48] sm:$0xf]
    %v216 = vld [vmem:[#allocation2 + $0x4c] sm:$0xf]
    %v217 = vld [vmem:[#allocation2 + $0x50] sm:$0xf]
    %v218 = vld [vmem:[#allocation2 + $0x54] sm:$0xf]
    %v219 = vld [vmem:[#allocation2 + $0x58] sm:$0xf]
    %v220 = vld [vmem:[#allocation2 + $0x5c] sm:$0xf]
    %v221 = vld [vmem:[#allocation2 + $0x60] sm:$0xf]
    %v222 = vld [vmem:[#allocation2 + $0x64] sm:$0xf]
    %v223 = vld [vmem:[#allocation2 + $0x68] sm:$0xf]
    %v224 = vld [vmem:[#allocation2 + $0x6c] sm:$0xf]
    %v225 = vld [vmem:[#allocation2 + $0x70] sm:$0xf]
    %v226 = vld [vmem:[#allocation2 + $0x74] sm:$0xf]
    %v227 = vld [vmem:[#allocation2 + $0x78] sm:$0xf]
    %v228 = vld [vmem:[#allocation2 + $0x7c] sm:$0xf]
    %v229 = vld [vmem:[#allocation2 + $0x80] sm:$0xf]
    %v230 = vld [vmem:[#allocation2 + $0x84] sm:$0xf]
    %v231 = vld [vmem:[#allocation2 + $0x88] sm:$0xf]
    %v232 = vld [vmem:[#allocation2 + $0x8c] sm:$0xf]
    %v233 = vld [vmem:[#allocation2 + $0x90] sm:$0xf]
    %v234 = vld [vmem:[#allocation2 + $0x94] sm:$0xf]
    %v235 = vld [vmem:[#allocation2 + $0x98] sm:$0xf]
    %v236 = vld [vmem:[#allocation2 + $0x9c] sm:$0xf]
    %v237 = vld [vmem:[#allocation2 + $0xa0] sm:$0xf]
    %v238 = vld [vmem:[#allocation2 + $0xa4] sm:$0xf]
    %v239 = vld [vmem:[#allocation2 + $0xa8] sm:$0xf]
    %v240 = vld [vmem:[#allocation2 + $0xac] sm:$0xf]
    %v241 = vld [vmem:[#allocation2 + $0xb0] sm:$0xf]
    %v242 = vld [vmem:[#allocation2 + $0xb4] sm:$0xf]
    %v243 = vld [vmem:[#allocation2 + $0xb8] sm:$0xf]
    %v244 = vld [vmem:[#allocation2 + $0xbc] sm:$0xf]
    %v245 = vld [vmem:[#allocation2 + $0xc0] sm:$0xf]
    %v246 = vld [vmem:[#allocation2 + $0xc4] sm:$0xf]
    %v247 = vld [vmem:[#allocation2 + $0xc8] sm:$0xf]
    %v248 = vld [vmem:[#allocation2 + $0xcc] sm:$0xf]
    %v249 = vld [vmem:[#allocation2 + $0xd0] sm:$0xf]
    %v250 = vld [vmem:[#allocation2 + $0xd4] sm:$0xf]
    %v251 = vld [vmem:[#allocation2 + $0xd8] sm:$0xf]
    %v252 = vld [vmem:[#allocation2 + $0xdc] sm:$0xf]
    %v253 = vld [vmem:[#allocation2 + $0xe0] sm:$0xf]
    %v254 = vld [vmem:[#allocation2 + $0xe4] sm:$0xf]
    %v255 = vld [vmem:[#allocation2 + $0xe8] sm:$0xf]
    %v256 = vld [vmem:[#allocation2 + $0xec] sm:$0xf]
    %v257 = vld [vmem:[#allocation2 + $0xf0] sm:$0xf]
    %v258 = vld [vmem:[#allocation2 + $0xf4] sm:$0xf]
    %v259 = vld [vmem:[#allocation2 + $0xf8] sm:$0xf]
    %v260 = vld [vmem:[#allocation2 + $0xfc] sm:$0xf]
    %v261 = vld [vmem:[#allocation2 + $0x100] sm:$0xf]
    %v262 = vld [vmem:[#allocation2 + $0x104] sm:$0xf]
    %v263 = vld [vmem:[#allocation2 + $0x108] sm:$0xf]
    %v264 = vld [vmem:[#allocation2 + $0x10c] sm:$0xf]
    %v265 = vld [vmem:[#allocation2 + $0x110] sm:$0xf]
    %v266 = vld [vmem:[#allocation2 + $0x114] sm:$0xf]
    %v267 = vld [vmem:[#allocation2 + $0x118] sm:$0xf]
    %v268 = vld [vmem:[#allocation2 + $0x11c] sm:$0xf]
    %v269 = vld [vmem:[#allocation2 + $0x120] sm:$0xf]
    %v270 = vld [vmem:[#allocation2 + $0x124] sm:$0xf]
    %v271 = vld [vmem:[#allocation2 + $0x128] sm:$0xf]
    %v272 = vld [vmem:[#allocation2 + $0x12c] sm:$0xf]
    %v273 = vld [vmem:[#allocation2 + $0x130] sm:$0xf]
    %v274 = vld [vmem:[#allocation2 + $0x134] sm:$0xf]
    %v275 = vld [vmem:[#allocation2 + $0x138] sm:$0xf]
    %v276 = vld [vmem:[#allocation2 + $0x13c] sm:$0xf]
    %v277 = vld [vmem:[#allocation2 + $0x140] sm:$0xf]
    %v278 = vld [vmem:[#allocation2 + $0x144] sm:$0xf]
    %v279 = vld [vmem:[#allocation2 + $0x148] sm:$0xf]
    %v280 = vld [vmem:[#allocation2 + $0x14c] sm:$0xf]
    %v281 = vld [vmem:[#allocation2 + $0x150] sm:$0xf]
    %v282 = vld [vmem:[#allocation2 + $0x154] sm:$0xf]
    %v283 = vld [vmem:[#allocation2 + $0x158] sm:$0xf]
    %v284 = vld [vmem:[#allocation2 + $0x15c] sm:$0xf]
    %v285 = vld [vmem:[#allocation2 + $0x160] sm:$0xf]
    %v286 = vld [vmem:[#allocation2 + $0x164] sm:$0xf]
    %v287 = vld [vmem:[#allocation2 + $0x168] sm:$0xf]
    %v288 = vld [vmem:[#allocation2 + $0x16c] sm:$0xf]
    %v289 = vld [vmem:[#allocation2 + $0x170] sm:$0xf]
    %v290 = vld [vmem:[#allocation2 + $0x174] sm:$0xf]
    %v291 = vld [vmem:[#allocation2 + $0x178] sm:$0xf]
    %v292 = vld [vmem:[#allocation2 + $0x17c] sm:$0xf]
    %v293 = vld [vmem:[#allocation2 + $0x180] sm:$0xf]
    %v294 = vld [vmem:[#allocation2 + $0x184] sm:$0xf]
    %v295 = vld [vmem:[#allocation2 + $0x188] sm:$0xf]
    %v296 = vld [vmem:[#allocation2 + $0x18c] sm:$0xf]
    %v297 = vld [vmem:[#allocation2 + $0x190] sm:$0xf]
    %v298 = vld [vmem:[#allocation2 + $0x194] sm:$0xf]
    %v299 = vld [vmem:[#allocation2 + $0x198] sm:$0xf]
    %v300 = vld [vmem:[#allocation2 + $0x19c] sm:$0xf]
    %v301 = vld [vmem:[#allocation2 + $0x1a0] sm:$0xf]
    %v302 = vld [vmem:[#allocation2 + $0x1a4] sm:$0xf]
    %v303 = vld [vmem:[#allocation2 + $0x1a8] sm:$0xf]
    %v304 = vld [vmem:[#allocation2 + $0x1ac] sm:$0xf]
    %v305 = vld [vmem:[#allocation2 + $0x1b0] sm:$0xf]
    %v306 = vld [vmem:[#allocation2 + $0x1b4] sm:$0xf]
    %v307 = vld [vmem:[#allocation2 + $0x1b8] sm:$0xf]
    %v308 = vld [vmem:[#allocation2 + $0x1bc] sm:$0xf]
    %v309 = vld [vmem:[#allocation2 + $0x1c0] sm:$0xf]
    %v310 = vld [vmem:[#allocation2 + $0x1c4] sm:$0xf]
    %v311 = vld [vmem:[#allocation2 + $0x1c8] sm:$0xf]
    %v312 = vld [vmem:[#allocation2 + $0x1cc] sm:$0xf]
    %v313 = vld [vmem:[#allocation2 + $0x1d0] sm:$0xf]
    %v314 = vld [vmem:[#allocation2 + $0x1d4] sm:$0xf]
    %v315 = vld [vmem:[#allocation2 + $0x1d8] sm:$0xf]
    %v316 = vld [vmem:[#allocation2 + $0x1dc] sm:$0xf]
    %v317 = vld [vmem:[#allocation2 + $0x1e0] sm:$0xf]
    %v318 = vld [vmem:[#allocation2 + $0x1e4] sm:$0xf]
    %v319 = vld [vmem:[#allocation2 + $0x1e8] sm:$0xf]
    %v320 = vld [vmem:[#allocation2 + $0x1ec] sm:$0xf]
    %v321 = vld [vmem:[#allocation2 + $0x1f0] sm:$0xf]
    %v322 = vld [vmem:[#allocation2 + $0x1f4] sm:$0xf]
    %v323 = vld [vmem:[#allocation2 + $0x1f8] sm:$0xf]
    %v324 = vld [vmem:[#allocation2 + $0x1fc] sm:$0xf]
    %v325 = vld [vmem:[#allocation2 + $0x200] sm:$0xf]
    %v326 = vld [vmem:[#allocation2 + $0x204] sm:$0xf]
    %v327 = vld [vmem:[#allocation2 + $0x208] sm:$0xf]
    %v328 = vld [vmem:[#allocation2 + $0x20c] sm:$0xf]
    %v329 = vld [vmem:[#allocation2 + $0x210] sm:$0xf]
    %v330 = vld [vmem:[#allocation2 + $0x214] sm:$0xf]
    %v331 = vld [vmem:[#allocation2 + $0x218] sm:$0xf]
    %v332 = vld [vmem:[#allocation2 + $0x21c] sm:$0xf]
    %v333 = vld [vmem:[#allocation2 + $0x220] sm:$0xf]
    %v334 = vld [vmem:[#allocation2 + $0x224] sm:$0xf]
    %v335 = vld [vmem:[#allocation2 + $0x228] sm:$0xf]
    %v336 = vld [vmem:[#allocation2 + $0x22c] sm:$0xf]
    %v337 = vld [vmem:[#allocation2 + $0x230] sm:$0xf]
    %v338 = vld [vmem:[#allocation2 + $0x234] sm:$0xf]
    %v339 = vld [vmem:[#allocation2 + $0x238] sm:$0xf]
    %v340 = vld [vmem:[#allocation2 + $0x23c] sm:$0xf]
    %v485 = vunpack.c.l.b16 %v197
    %v486 = vunpack.c.l.b16 %v198
    %v487 = vunpack.c.l.b16 %v199
    %v488 = vunpack.c.l.b16 %v200
    %v489 = vunpack.c.l.b16 %v201
    %v490 = vunpack.c.l.b16 %v202
    %v491 = vunpack.c.l.b16 %v203
    %v492 = vunpack.c.l.b16 %v204
    %v493 = vunpack.c.l.b16 %v205
    %v494 = vunpack.c.l.b16 %v206
    %v495 = vunpack.c.l.b16 %v207
    %v496 = vunpack.c.l.b16 %v208
    %v497 = vunpack.c.l.b16 %v209
    %v498 = vunpack.c.l.b16 %v210
    %v499 = vunpack.c.l.b16 %v211
    %v500 = vunpack.c.l.b16 %v212
    %v501 = vunpack.c.l.b16 %v213
    %v502 = vunpack.c.l.b16 %v214
    %v503 = vunpack.c.l.b16 %v215
    %v504 = vunpack.c.l.b16 %v216
    %v505 = vunpack.c.l.b16 %v217
    %v506 = vunpack.c.l.b16 %v218
    %v507 = vunpack.c.l.b16 %v219
    %v508 = vunpack.c.l.b16 %v220
    %v509 = vunpack.c.l.b16 %v221
    %v510 = vunpack.c.l.b16 %v222
    %v511 = vunpack.c.l.b16 %v223
    %v512 = vunpack.c.l.b16 %v224
    %v513 = vunpack.c.l.b16 %v225
    %v514 = vunpack.c.l.b16 %v226
    %v515 = vunpack.c.l.b16 %v227
    %v516 = vunpack.c.l.b16 %v228
    %v517 = vunpack.c.l.b16 %v229
    %v518 = vunpack.c.l.b16 %v230
    %v519 = vunpack.c.l.b16 %v231
    %v520 = vunpack.c.l.b16 %v232
    %v521 = vunpack.c.l.b16 %v233
    %v522 = vunpack.c.l.b16 %v234
    %v523 = vunpack.c.l.b16 %v235
    %v524 = vunpack.c.l.b16 %v236
    %v525 = vunpack.c.l.b16 %v237
    %v526 = vunpack.c.l.b16 %v238
    %v527 = vunpack.c.l.b16 %v239
    %v528 = vunpack.c.l.b16 %v240
    %v529 = vunpack.c.l.b16 %v241
    %v530 = vunpack.c.l.b16 %v242
    %v531 = vunpack.c.l.b16 %v243
    %v532 = vunpack.c.l.b16 %v244
    %v533 = vunpack.c.l.b16 %v245
    %v534 = vunpack.c.l.b16 %v246
    %v535 = vunpack.c.l.b16 %v247
    %v536 = vunpack.c.l.b16 %v248
    %v537 = vunpack.c.l.b16 %v249
    %v538 = vunpack.c.l.b16 %v250
    %v539 = vunpack.c.l.b16 %v251
    %v540 = vunpack.c.l.b16 %v252
    %v541 = vunpack.c.l.b16 %v253
    %v542 = vunpack.c.l.b16 %v254
    %v543 = vunpack.c.l.b16 %v255
    %v544 = vunpack.c.l.b16 %v256
    %v545 = vunpack.c.l.b16 %v257
    %v546 = vunpack.c.l.b16 %v258
    %v547 = vunpack.c.l.b16 %v259
    %v548 = vunpack.c.l.b16 %v260
    %v549 = vunpack.c.l.b16 %v261
    %v550 = vunpack.c.l.b16 %v262
    %v551 = vunpack.c.l.b16 %v263
    %v552 = vunpack.c.l.b16 %v264
    %v553 = vunpack.c.l.b16 %v265
    %v554 = vunpack.c.l.b16 %v266
    %v555 = vunpack.c.l.b16 %v267
    %v556 = vunpack.c.l.b16 %v268
    %v557 = vunpack.c.l.b16 %v269
    %v558 = vunpack.c.l.b16 %v270
    %v559 = vunpack.c.l.b16 %v271
    %v560 = vunpack.c.l.b16 %v272
    %v561 = vunpack.c.l.b16 %v273
    %v562 = vunpack.c.l.b16 %v274
    %v563 = vunpack.c.l.b16 %v275
    %v564 = vunpack.c.l.b16 %v276
    %v565 = vunpack.c.l.b16 %v277
    %v566 = vunpack.c.l.b16 %v278
    %v567 = vunpack.c.l.b16 %v279
    %v568 = vunpack.c.l.b16 %v280
    %v569 = vunpack.c.l.b16 %v281
    %v570 = vunpack.c.l.b16 %v282
    %v571 = vunpack.c.l.b16 %v283
    %v572 = vunpack.c.l.b16 %v284
    %v573 = vunpack.c.l.b16 %v285
    %v574 = vunpack.c.l.b16 %v286
    %v575 = vunpack.c.l.b16 %v287
    %v576 = vunpack.c.l.b16 %v288
    %v577 = vunpack.c.l.b16 %v289
    %v578 = vunpack.c.l.b16 %v290
    %v579 = vunpack.c.l.b16 %v291
    %v580 = vunpack.c.l.b16 %v292
    %v581 = vunpack.c.l.b16 %v293
    %v582 = vunpack.c.l.b16 %v294
    %v583 = vunpack.c.l.b16 %v295
    %v584 = vunpack.c.l.b16 %v296
    %v585 = vunpack.c.l.b16 %v297
    %v586 = vunpack.c.l.b16 %v298
    %v587 = vunpack.c.l.b16 %v299
    %v588 = vunpack.c.l.b16 %v300
    %v589 = vunpack.c.l.b16 %v301
    %v590 = vunpack.c.l.b16 %v302
    %v591 = vunpack.c.l.b16 %v303
    %v592 = vunpack.c.l.b16 %v304
    %v593 = vunpack.c.l.b16 %v305
    %v594 = vunpack.c.l.b16 %v306
    %v595 = vunpack.c.l.b16 %v307
    %v596 = vunpack.c.l.b16 %v308
    %v597 = vunpack.c.l.b16 %v309
    %v598 = vunpack.c.l.b16 %v310
    %v599 = vunpack.c.l.b16 %v311
    %v600 = vunpack.c.l.b16 %v312
    %v601 = vunpack.c.l.b16 %v313
    %v602 = vunpack.c.l.b16 %v314
    %v603 = vunpack.c.l.b16 %v315
    %v604 = vunpack.c.l.b16 %v316
    %v605 = vunpack.c.l.b16 %v317
    %v606 = vunpack.c.l.b16 %v318
    %v607 = vunpack.c.l.b16 %v319
    %v608 = vunpack.c.l.b16 %v320
    %v609 = vunpack.c.l.b16 %v321
    %v610 = vunpack.c.l.b16 %v322
    %v611 = vunpack.c.l.b16 %v323
    %v612 = vunpack.c.l.b16 %v324
    %v613 = vunpack.c.l.b16 %v325
    %v614 = vunpack.c.l.b16 %v326
    %v615 = vunpack.c.l.b16 %v327
    %v616 = vunpack.c.l.b16 %v328
    %v617 = vunpack.c.l.b16 %v329
    %v618 = vunpack.c.l.b16 %v330
    %v619 = vunpack.c.l.b16 %v331
    %v620 = vunpack.c.l.b16 %v332
    %v621 = vunpack.c.l.b16 %v333
    %v622 = vunpack.c.l.b16 %v334
    %v623 = vunpack.c.l.b16 %v335
    %v624 = vunpack.c.l.b16 %v336
    %v625 = vunpack.c.l.b16 %v337
    %v626 = vunpack.c.l.b16 %v338
    %v627 = vunpack.c.l.b16 %v339
    %v628 = vunpack.c.l.b16 %v340
    %v629 = vpack.c.b16 %v486, %v485
    %v630 = vpack.c.b16 %v488, %v487
    %v631 = vpack.c.b16 %v490, %v489
    %v632 = vpack.c.b16 %v492, %v491
    %v633 = vpack.c.b16 %v494, %v493
    %v634 = vpack.c.b16 %v496, %v495
    %v635 = vpack.c.b16 %v498, %v497
    %v636 = vpack.c.b16 %v500, %v499
    %v637 = vpack.c.b16 %v502, %v501
    %v638 = vpack.c.b16 %v504, %v503
    %v639 = vpack.c.b16 %v506, %v505
    %v640 = vpack.c.b16 %v508, %v507
    %v641 = vpack.c.b16 %v510, %v509
    %v642 = vpack.c.b16 %v512, %v511
    %v643 = vpack.c.b16 %v514, %v513
    %v644 = vpack.c.b16 %v516, %v515
    %v645 = vpack.c.b16 %v518, %v517
    %v646 = vpack.c.b16 %v520, %v519
    %v647 = vpack.c.b16 %v522, %v521
    %v648 = vpack.c.b16 %v524, %v523
    %v649 = vpack.c.b16 %v526, %v525
    %v650 = vpack.c.b16 %v528, %v527
    %v651 = vpack.c.b16 %v530, %v529
    %v652 = vpack.c.b16 %v532, %v531
    %v653 = vpack.c.b16 %v534, %v533
    %v654 = vpack.c.b16 %v536, %v535
    %v655 = vpack.c.b16 %v538, %v537
    %v656 = vpack.c.b16 %v540, %v539
    %v657 = vpack.c.b16 %v542, %v541
    %v658 = vpack.c.b16 %v544, %v543
    %v659 = vpack.c.b16 %v546, %v545
    %v660 = vpack.c.b16 %v548, %v547
    %v661 = vpack.c.b16 %v550, %v549
    %v662 = vpack.c.b16 %v552, %v551
    %v663 = vpack.c.b16 %v554, %v553
    %v664 = vpack.c.b16 %v556, %v555
    %v665 = vpack.c.b16 %v558, %v557
    %v666 = vpack.c.b16 %v560, %v559
    %v667 = vpack.c.b16 %v562, %v561
    %v668 = vpack.c.b16 %v564, %v563
    %v669 = vpack.c.b16 %v566, %v565
    %v670 = vpack.c.b16 %v568, %v567
    %v671 = vpack.c.b16 %v570, %v569
    %v672 = vpack.c.b16 %v572, %v571
    %v673 = vpack.c.b16 %v574, %v573
    %v674 = vpack.c.b16 %v576, %v575
    %v675 = vpack.c.b16 %v578, %v577
    %v676 = vpack.c.b16 %v580, %v579
    %v677 = vpack.c.b16 %v582, %v581
    %v678 = vpack.c.b16 %v584, %v583
    %v679 = vpack.c.b16 %v586, %v585
    %v680 = vpack.c.b16 %v588, %v587
    %v681 = vpack.c.b16 %v590, %v589
    %v682 = vpack.c.b16 %v592, %v591
    %v683 = vpack.c.b16 %v594, %v593
    %v684 = vpack.c.b16 %v596, %v595
    %v685 = vpack.c.b16 %v598, %v597
    %v686 = vpack.c.b16 %v600, %v599
    %v687 = vpack.c.b16 %v602, %v601
    %v688 = vpack.c.b16 %v604, %v603
    %v689 = vpack.c.b16 %v606, %v605
    %v690 = vpack.c.b16 %v608, %v607
    %v691 = vpack.c.b16 %v610, %v609
    %v692 = vpack.c.b16 %v612, %v611
    %v693 = vpack.c.b16 %v614, %v613
    %v694 = vpack.c.b16 %v616, %v615
    %v695 = vpack.c.b16 %v618, %v617
    %v696 = vpack.c.b16 %v620, %v619
    %v697 = vpack.c.b16 %v622, %v621
    %v698 = vpack.c.b16 %v624, %v623
    %v699 = vpack.c.b16 %v626, %v625
    %v700 = vpack.c.b16 %v628, %v627
    %773 = vmatprep.subr.bf16.mxu0 0
    %774 = vmatpush1.bf16.msra.mxu0 %v636
    %775 = vmatprep.subr.bf16.mxu0 0
    %776 = vmatpush1.bf16.msra.mxu0 %v635
    %777 = vmatprep.subr.bf16.mxu0 0
    %778 = vmatpush1.bf16.msra.mxu0 %v634
    %779 = vmatprep.subr.bf16.mxu0 0
    %780 = vmatpush1.bf16.msra.mxu0 %v633
    %781 = vmatprep.subr.bf16.mxu0 0
    %782 = vmatpush1.bf16.msra.mxu0 %v632
    %783 = vmatprep.subr.bf16.mxu0 0
    %784 = vmatpush1.bf16.msra.mxu0 %v631
    %785 = vmatprep.subr.bf16.mxu0 0
    %786 = vmatpush1.bf16.msra.mxu0 %v630
    %787 = vmatprep.subr.bf16.mxu0 0
    %788 = vmatpush1.bf16.msra.mxu0 %v629
    %789 = vmatprep.subr.bf16.mxu0 0
    %790 = vmatpush2.bf16.msra.mxu0 %v644
    %791 = vmatprep.subr.bf16.mxu0 0
    %792 = vmatpush2.bf16.msra.mxu0 %v643
    %793 = vmatprep.subr.bf16.mxu0 0
    %794 = vmatpush2.bf16.msra.mxu0 %v642
    %795 = vmatprep.subr.bf16.mxu0 0
    %796 = vmatpush2.bf16.msra.mxu0 %v641
    %797 = vmatprep.subr.bf16.mxu0 0
    %798 = vmatpush2.bf16.msra.mxu0 %v640
    %799 = vmatprep.subr.bf16.mxu0 0
    %800 = vmatpush2.bf16.msra.mxu0 %v639
    %801 = vmatprep.subr.bf16.mxu0 0
    %802 = vmatpush2.bf16.msra.mxu0 %v638
    %803 = vmatprep.subr.bf16.mxu0 0
    %804 = vmatpush2.bf16.msra.mxu0 %v637
    %805 = vmatprep.mubr.bf16.mxu0 %v189
    %806 = vmatmul.mubr.bf16.gmra.mxu0 %v188
    %v807 = vpop.f32.mrf.mxu0
    %v808 = vadd.f32 0.0, %v807
    %v809 = vpop.f32.mrf.mxu0
    %v810 = vpop.f32.mrf.mxu0
    %v811 = vpop.f32.mrf.mxu0
    %812 = vdwg.mxu0
    %813 = vmatprep.subr.bf16.mxu0 0
    %814 = vmatpush1.bf16.msra.mxu0 %v652
    %815 = vmatprep.subr.bf16.mxu0 0
    %816 = vmatpush1.bf16.msra.mxu0 %v651
    %817 = vmatprep.subr.bf16.mxu0 0
    %818 = vmatpush1.bf16.msra.mxu0 %v650
    %819 = vmatprep.subr.bf16.mxu0 0
    %820 = vmatpush1.bf16.msra.mxu0 %v649
    %821 = vmatprep.subr.bf16.mxu0 0
    %822 = vmatpush1.bf16.msra.mxu0 %v648
    %823 = vmatprep.subr.bf16.mxu0 0
    %824 = vmatpush1.bf16.msra.mxu0 %v647
    %825 = vmatprep.subr.bf16.mxu0 0
    %826 = vmatpush1.bf16.msra.mxu0 %v646
    %827 = vmatprep.subr.bf16.mxu0 0
    %828 = vmatpush1.bf16.msra.mxu0 %v645
    %829 = vmatprep.subr.bf16.mxu0 0
    %830 = vmatpush2.bf16.msra.mxu0 %v660
    %831 = vmatprep.subr.bf16.mxu0 0
    %832 = vmatpush2.bf16.msra.mxu0 %v659
    %833 = vmatprep.subr.bf16.mxu0 0
    %834 = vmatpush2.bf16.msra.mxu0 %v658
    %835 = vmatprep.subr.bf16.mxu0 0
    %836 = vmatpush2.bf16.msra.mxu0 %v657
    %837 = vmatprep.subr.bf16.mxu0 0
    %838 = vmatpush2.bf16.msra.mxu0 %v656
    %839 = vmatprep.subr.bf16.mxu0 0
    %840 = vmatpush2.bf16.msra.mxu0 %v655
    %841 = vmatprep.subr.bf16.mxu0 0
    %842 = vmatpush2.bf16.msra.mxu0 %v654
    %843 = vmatprep.subr.bf16.mxu0 0
    %844 = vmatpush2.bf16.msra.mxu0 %v653
    %845 = vmatprep.mubr.bf16.mxu0 %v191
    %846 = vmatmul.mubr.bf16.gmra.mxu0 %v190
    %v847 = vpop.f32.mrf.mxu0
    %v848 = vadd.f32 %v808, %v847
    %v849 = vpop.f32.mrf.mxu0
    %v850 = vpop.f32.mrf.mxu0
    %v851 = vpop.f32.mrf.mxu0
    %852 = vdwg.mxu0
    %853 = vmatprep.subr.bf16.mxu0 0
    %854 = vmatpush1.bf16.msra.mxu0 %v668
    %855 = vmatprep.subr.bf16.mxu0 0
    %856 = vmatpush1.bf16.msra.mxu0 %v667
    %857 = vmatprep.subr.bf16.mxu0 0
    %858 = vmatpush1.bf16.msra.mxu0 %v666
    %859 = vmatprep.subr.bf16.mxu0 0
    %860 = vmatpush1.bf16.msra.mxu0 %v665
    %861 = vmatprep.subr.bf16.mxu0 0
    %862 = vmatpush1.bf16.msra.mxu0 %v664
    %863 = vmatprep.subr.bf16.mxu0 0
    %864 = vmatpush1.bf16.msra.mxu0 %v663
    %865 = vmatprep.subr.bf16.mxu0 0
    %866 = vmatpush1.bf16.msra.mxu0 %v662
    %867 = vmatprep.subr.bf16.mxu0 0
    %868 = vmatpush1.bf16.msra.mxu0 %v661
    %869 = vmatprep.subr.bf16.mxu0 0
    %870 = vmatpush2.bf16.msra.mxu0 %v676
    %871 = vmatprep.subr.bf16.mxu0 0
    %872 = vmatpush2.bf16.msra.mxu0 %v675
    %873 = vmatprep.subr.bf16.mxu0 0
    %874 = vmatpush2.bf16.msra.mxu0 %v674
    %875 = vmatprep.subr.bf16.mxu0 0
    %876 = vmatpush2.bf16.msra.mxu0 %v673
    %877 = vmatprep.subr.bf16.mxu0 0
    %878 = vmatpush2.bf16.msra.mxu0 %v672
    %879 = vmatprep.subr.bf16.mxu0 0
    %880 = vmatpush2.bf16.msra.mxu0 %v671
    %881 = vmatprep.subr.bf16.mxu0 0
    %882 = vmatpush2.bf16.msra.mxu0 %v670
    %883 = vmatprep.subr.bf16.mxu0 0
    %884 = vmatpush2.bf16.msra.mxu0 %v669
    %885 = vmatprep.mubr.bf16.mxu0 %v193
    %886 = vmatmul.mubr.bf16.gmra.mxu0 %v192
    %v887 = vpop.f32.mrf.mxu0
    %v888 = vadd.f32 %v848, %v887
    %v889 = vpop.f32.mrf.mxu0
    %v890 = vpop.f32.mrf.mxu0
    %v891 = vpop.f32.mrf.mxu0
    %892 = vdwg.mxu0
    %893 = vmatprep.subr.bf16.mxu0 0
    %894 = vmatpush1.bf16.msra.mxu0 %v684
    %895 = vmatprep.subr.bf16.mxu0 0
    %896 = vmatpush1.bf16.msra.mxu0 %v683
    %897 = vmatprep.subr.bf16.mxu0 0
    %898 = vmatpush1.bf16.msra.mxu0 %v682
    %899 = vmatprep.subr.bf16.mxu0 0
    %900 = vmatpush1.bf16.msra.mxu0 %v681
    %901 = vmatprep.subr.bf16.mxu0 0
    %902 = vmatpush1.bf16.msra.mxu0 %v680
    %903 = vmatprep.subr.bf16.mxu0 0
    %904 = vmatpush1.bf16.msra.mxu0 %v679
    %905 = vmatprep.subr.bf16.mxu0 0
    %906 = vmatpush1.bf16.msra.mxu0 %v678
    %907 = vmatprep.subr.bf16.mxu0 0
    %908 = vmatpush1.bf16.msra.mxu0 %v677
    %909 = vmatprep.subr.bf16.mxu0 0
    %910 = vmatpush2.bf16.msra.mxu0 %v692
    %911 = vmatprep.subr.bf16.mxu0 0
    %912 = vmatpush2.bf16.msra.mxu0 %v691
    %913 = vmatprep.subr.bf16.mxu0 0
    %914 = vmatpush2.bf16.msra.mxu0 %v690
    %915 = vmatprep.subr.bf16.mxu0 0
    %916 = vmatpush2.bf16.msra.mxu0 %v689
    %917 = vmatprep.subr.bf16.mxu0 0
    %918 = vmatpush2.bf16.msra.mxu0 %v688
    %919 = vmatprep.subr.bf16.mxu0 0
    %920 = vmatpush2.bf16.msra.mxu0 %v687
    %921 = vmatprep.subr.bf16.mxu0 0
    %922 = vmatpush2.bf16.msra.mxu0 %v686
    %923 = vmatprep.subr.bf16.mxu0 0
    %924 = vmatpush2.bf16.msra.mxu0 %v685
    %925 = vmatprep.mubr.bf16.mxu0 %v195
    %926 = vmatmul.mubr.bf16.gmra.mxu0 %v194
    %v927 = vpop.f32.mrf.mxu0
    %v928 = vadd.f32 %v888, %v927
    %v929 = vpop.f32.mrf.mxu0
    %v930 = vpop.f32.mrf.mxu0
    %v931 = vpop.f32.mrf.mxu0
    %932 = vdwg.mxu0
    %933 = vmatprep.subr.bf16.mxu0 0
    %934 = vmatpush1.bf16.msra.mxu0 %v700
    %935 = vmatprep.subr.bf16.mxu0 0
    %936 = vmatpush1.bf16.msra.mxu0 %v699
    %937 = vmatprep.subr.bf16.mxu0 0
    %938 = vmatpush1.bf16.msra.mxu0 %v698
    %939 = vmatprep.subr.bf16.mxu0 0
    %940 = vmatpush1.bf16.msra.mxu0 %v697
    %941 = vmatprep.subr.bf16.mxu0 0
    %942 = vmatpush1.bf16.msra.mxu0 %v696
    %943 = vmatprep.subr.bf16.mxu0 0
    %944 = vmatpush1.bf16.msra.mxu0 %v695
    %945 = vmatprep.subr.bf16.mxu0 0
    %946 = vmatpush1.bf16.msra.mxu0 %v694
    %947 = vmatprep.subr.bf16.mxu0 0
    %948 = vmatpush1.bf16.msra.mxu0 %v693
    %949 = vmatprep.subr.bf16.mxu0 0
    %950 = vmatpush2.bf16.msra.mxu0 0
    %951 = vmatprep.subr.bf16.mxu0 0
    %952 = vmatpush2.bf16.msra.mxu0 0
    %953 = vmatprep.subr.bf16.mxu0 0
    %954 = vmatpush2.bf16.msra.mxu0 0
    %955 = vmatprep.subr.bf16.mxu0 0
    %956 = vmatpush2.bf16.msra.mxu0 0
    %957 = vmatprep.subr.bf16.mxu0 0
    %958 = vmatpush2.bf16.msra.mxu0 0
    %959 = vmatprep.subr.bf16.mxu0 0
    %960 = vmatpush2.bf16.msra.mxu0 0
    %961 = vmatprep.subr.bf16.mxu0 0
    %962 = vmatpush2.bf16.msra.mxu0 0
    %963 = vmatprep.subr.bf16.mxu0 0
    %964 = vmatpush2.bf16.msra.mxu0 0
    %965 = vmatprep.mubr.bf16.mxu0 0
    %966 = vmatmul.mubr.bf16.gmra.mxu0 %v196
    %v967 = vpop.f32.mrf.mxu0
    %v968 = vadd.f32 %v928, %v967
    %v969 = vpop.f32.mrf.mxu0
    %v970 = vpop.f32.mrf.mxu0
    %v971 = vpop.f32.mrf.mxu0
    %972 = vdwg.mxu0
    %v973 = vxor.u32 %v968, 2147483648
    %v974 = vmul.f32 %v973, 1.442695
    %v975 = vpow.pop %v974
    %v976 = vadd.f32 %v975, 1.0
    %v977 = vrcp.pop %v976
    %v978 = vmul.f32 1.0, %v977
    %v979 = vmul.f32 %v968, %v978
    %v980 = vsub.f32 %v968, -2.2
    %v981 = vsub.f32 %v968, -1.8
    %v982 = vsub.f32 %v968, -1.4
    %v983 = vsub.f32 %v968, -1.0
    %v984 = vsub.f32 %v968, -0.6
    %v985 = vsub.f32 %v968, -0.2
    %v986 = vsub.f32 %v968, 0.2
    %v987 = vsub.f32 %v968, 0.6
    %v988 = vsub.f32 %v968, 1.0
    %v989 = vsub.f32 %v968, 1.4
    %v990 = vsub.f32 %v968, 1.8
    %v991 = vsub.f32 %v968, 2.2
    %vm992 = vcmp.ge.f32.partialorder %v968, -2.2
    %vm993 = vcmp.lt.f32.partialorder %v968, -1.8
    %vm994 = vmand %vm992, %vm993
    %v995 = vsel %vm994, 1.0, 0.0
    %vm996 = vcmp.ge.f32.partialorder %v968, -1.8
    %vm997 = vcmp.lt.f32.partialorder %v968, -1.4
    %vm998 = vmand %vm996, %vm997
    %v999 = vsel %vm998, 1.0, 0.0
    %vm1000 = vcmp.ge.f32.partialorder %v968, -1.4
    %vm1001 = vcmp.lt.f32.partialorder %v968, -1.0
    %vm1002 = vmand %vm1000, %vm1001
    %v1003 = vsel %vm1002, 1.0, 0.0
    %vm1004 = vcmp.ge.f32.partialorder %v968, -1.0
    %vm1005 = vcmp.lt.f32.partialorder %v968, -0.6
    %vm1006 = vmand %vm1004, %vm1005
    %v1007 = vsel %vm1006, 1.0, 0.0
    %vm1008 = vcmp.ge.f32.partialorder %v968, -0.6
    %vm1009 = vcmp.lt.f32.partialorder %v968, -0.2
    %vm1010 = vmand %vm1008, %vm1009
    %v1011 = vsel %vm1010, 1.0, 0.0
    %vm1012 = vcmp.ge.f32.partialorder %v968, -0.2
    %vm1013 = vcmp.lt.f32.partialorder %v968, 0.2
    %vm1014 = vmand %vm1012, %vm1013
    %v1015 = vsel %vm1014, 1.0, 0.0
    %vm1016 = vcmp.ge.f32.partialorder %v968, 0.2
    %vm1017 = vcmp.lt.f32.partialorder %v968, 0.6
    %vm1018 = vmand %vm1016, %vm1017
    %v1019 = vsel %vm1018, 1.0, 0.0
    %vm1020 = vcmp.ge.f32.partialorder %v968, 0.6
    %vm1021 = vcmp.lt.f32.partialorder %v968, 1.0
    %vm1022 = vmand %vm1020, %vm1021
    %v1023 = vsel %vm1022, 1.0, 0.0
    %vm1024 = vcmp.ge.f32.partialorder %v968, 1.0
    %vm1025 = vcmp.lt.f32.partialorder %v968, 1.4
    %vm1026 = vmand %vm1024, %vm1025
    %v1027 = vsel %vm1026, 1.0, 0.0
    %vm1028 = vcmp.ge.f32.partialorder %v968, 1.4
    %vm1029 = vcmp.lt.f32.partialorder %v968, 1.8
    %vm1030 = vmand %vm1028, %vm1029
    %v1031 = vsel %vm1030, 1.0, 0.0
    %vm1032 = vcmp.ge.f32.partialorder %v968, 1.8
    %vm1033 = vcmp.lt.f32.partialorder %v968, 2.2
    %vm1034 = vmand %vm1032, %vm1033
    %v1035 = vsel %vm1034, 1.0, 0.0
    %v1036 = vmul.f32 %v980, %v995
    %v1037 = vmul.f32 %v982, %v999
    %v1038 = vsub.f32 %v1036, %v1037
    %v1039 = vmul.f32 %v981, %v999
    %v1040 = vmul.f32 %v983, %v1003
    %v1041 = vsub.f32 %v1039, %v1040
    %v1042 = vmul.f32 %v982, %v1003
    %v1043 = vmul.f32 %v984, %v1007
    %v1044 = vsub.f32 %v1042, %v1043
    %v1045 = vmul.f32 %v983, %v1007
    %v1046 = vmul.f32 %v985, %v1011
    %v1047 = vsub.f32 %v1045, %v1046
    %v1048 = vmul.f32 %v984, %v1011
    %v1049 = vmul.f32 %v986, %v1015
    %v1050 = vsub.f32 %v1048, %v1049
    %v1051 = vmul.f32 %v985, %v1015
    %v1052 = vmul.f32 %v987, %v1019
    %v1053 = vsub.f32 %v1051, %v1052
    %v1054 = vmul.f32 %v986, %v1019
    %v1055 = vmul.f32 %v988, %v1023
    %v1056 = vsub.f32 %v1054, %v1055
    %v1057 = vmul.f32 %v987, %v1023
    %v1058 = vmul.f32 %v989, %v1027
    %v1059 = vsub.f32 %v1057, %v1058
    %v1060 = vmul.f32 %v988, %v1027
    %v1061 = vmul.f32 %v990, %v1031
    %v1062 = vsub.f32 %v1060, %v1061
    %v1063 = vmul.f32 %v989, %v1031
    %v1064 = vmul.f32 %v991, %v1035
    %v1065 = vsub.f32 %v1063, %v1064
    %v1066 = vmul.f32 %v980, %v1038
    %v1067 = vmul.f32 %v983, %v1041
    %v1068 = vsub.f32 %v1066, %v1067
    %v1069 = vmul.f32 %v981, %v1041
    %v1070 = vmul.f32 %v984, %v1044
    %v1071 = vsub.f32 %v1069, %v1070
    %v1072 = vmul.f32 %v982, %v1044
    %v1073 = vmul.f32 %v985, %v1047
    %v1074 = vsub.f32 %v1072, %v1073
    %v1075 = vmul.f32 %v983, %v1047
    %v1076 = vmul.f32 %v986, %v1050
    %v1077 = vsub.f32 %v1075, %v1076
    %v1078 = vmul.f32 %v984, %v1050
    %v1079 = vmul.f32 %v987, %v1053
    %v1080 = vsub.f32 %v1078, %v1079
    %v1081 = vmul.f32 %v985, %v1053
    %v1082 = vmul.f32 %v988, %v1056
    %v1083 = vsub.f32 %v1081, %v1082
    %v1084 = vmul.f32 %v986, %v1056
    %v1085 = vmul.f32 %v989, %v1059
    %v1086 = vsub.f32 %v1084, %v1085
    %v1087 = vmul.f32 %v987, %v1059
    %v1088 = vmul.f32 %v990, %v1062
    %v1089 = vsub.f32 %v1087, %v1088
    %v1090 = vmul.f32 %v988, %v1062
    %v1091 = vmul.f32 %v991, %v1065
    %v1092 = vsub.f32 %v1090, %v1091
    %v1093 = vmul.f32 %v980, %v1068
    %v1094 = vmul.f32 %v984, %v1071
    %v1095 = vsub.f32 %v1093, %v1094
    %v1096 = vmul.f32 %v981, %v1071
    %v1097 = vmul.f32 %v985, %v1074
    %v1098 = vsub.f32 %v1096, %v1097
    %v1099 = vmul.f32 %v982, %v1074
    %v1100 = vmul.f32 %v986, %v1077
    %v1101 = vsub.f32 %v1099, %v1100
    %v1102 = vmul.f32 %v983, %v1077
    %v1103 = vmul.f32 %v987, %v1080
    %v1104 = vsub.f32 %v1102, %v1103
    %v1105 = vmul.f32 %v984, %v1080
    %v1106 = vmul.f32 %v988, %v1083
    %v1107 = vsub.f32 %v1105, %v1106
    %v1108 = vmul.f32 %v985, %v1083
    %v1109 = vmul.f32 %v989, %v1086
    %v1110 = vsub.f32 %v1108, %v1109
    %v1111 = vmul.f32 %v986, %v1086
    %v1112 = vmul.f32 %v990, %v1089
    %v1113 = vsub.f32 %v1111, %v1112
    %v1114 = vmul.f32 %v987, %v1089
    %v1115 = vmul.f32 %v991, %v1092
    %v1116 = vsub.f32 %v1114, %v1115
    %v1117 = vpack.c.bf16 %v979, %v979
    %v1118 = vpack.c.bf16 %v1095, %v1095
    %v1119 = vpack.c.bf16 %v1098, %v1098
    %v1120 = vpack.c.bf16 %v1101, %v1101
    %v1121 = vpack.c.bf16 %v1104, %v1104
    %v1122 = vpack.c.bf16 %v1107, %v1107
    %v1123 = vpack.c.bf16 %v1110, %v1110
    %v1124 = vpack.c.bf16 %v1113, %v1113
    %v1125 = vpack.c.bf16 %v1116, %v1116
    %v1126 = vld [vmem:[#allocation4] sm:$0xf]
    %v1127 = vld [vmem:[#allocation4 + $0x4] sm:$0xf]
    %v1128 = vld [vmem:[#allocation4 + $0x8] sm:$0xf]
    %v1129 = vld [vmem:[#allocation4 + $0xc] sm:$0xf]
    %v1130 = vld [vmem:[#allocation4 + $0x10] sm:$0xf]
    %v1131 = vld [vmem:[#allocation4 + $0x14] sm:$0xf]
    %v1132 = vld [vmem:[#allocation4 + $0x18] sm:$0xf]
    %v1133 = vld [vmem:[#allocation4 + $0x1c] sm:$0xf]
    %v1134 = vld [vmem:[#allocation4 + $0x20] sm:$0xf]
    %v1135 = vld [vmem:[#allocation4 + $0x24] sm:$0xf]
    %v1136 = vld [vmem:[#allocation4 + $0x28] sm:$0xf]
    %v1137 = vld [vmem:[#allocation4 + $0x2c] sm:$0xf]
    %v1138 = vld [vmem:[#allocation4 + $0x30] sm:$0xf]
    %v1139 = vld [vmem:[#allocation4 + $0x34] sm:$0xf]
    %v1140 = vld [vmem:[#allocation4 + $0x38] sm:$0xf]
    %v1141 = vld [vmem:[#allocation4 + $0x3c] sm:$0xf]
    %v1142 = vld [vmem:[#allocation4 + $0x40] sm:$0xf]
    %v1143 = vld [vmem:[#allocation4 + $0x44] sm:$0xf]
    %v1144 = vld [vmem:[#allocation4 + $0x48] sm:$0xf]
    %v1145 = vld [vmem:[#allocation4 + $0x4c] sm:$0xf]
    %v1146 = vld [vmem:[#allocation4 + $0x50] sm:$0xf]
    %v1147 = vld [vmem:[#allocation4 + $0x54] sm:$0xf]
    %v1148 = vld [vmem:[#allocation4 + $0x58] sm:$0xf]
    %v1149 = vld [vmem:[#allocation4 + $0x5c] sm:$0xf]
    %v1150 = vld [vmem:[#allocation4 + $0x60] sm:$0xf]
    %v1151 = vld [vmem:[#allocation4 + $0x64] sm:$0xf]
    %v1152 = vld [vmem:[#allocation4 + $0x68] sm:$0xf]
    %v1153 = vld [vmem:[#allocation4 + $0x6c] sm:$0xf]
    %v1154 = vld [vmem:[#allocation4 + $0x70] sm:$0xf]
    %v1155 = vld [vmem:[#allocation4 + $0x74] sm:$0xf]
    %v1156 = vld [vmem:[#allocation4 + $0x78] sm:$0xf]
    %v1157 = vld [vmem:[#allocation4 + $0x7c] sm:$0xf]
    %v1158 = vld [vmem:[#allocation4 + $0x80] sm:$0xf]
    %v1159 = vld [vmem:[#allocation4 + $0x84] sm:$0xf]
    %v1160 = vld [vmem:[#allocation4 + $0x88] sm:$0xf]
    %v1161 = vld [vmem:[#allocation4 + $0x8c] sm:$0xf]
    %v1162 = vld [vmem:[#allocation4 + $0x90] sm:$0xf]
    %v1163 = vld [vmem:[#allocation4 + $0x94] sm:$0xf]
    %v1164 = vld [vmem:[#allocation4 + $0x98] sm:$0xf]
    %v1165 = vld [vmem:[#allocation4 + $0x9c] sm:$0xf]
    %v1166 = vld [vmem:[#allocation4 + $0xa0] sm:$0xf]
    %v1167 = vld [vmem:[#allocation4 + $0xa4] sm:$0xf]
    %v1168 = vld [vmem:[#allocation4 + $0xa8] sm:$0xf]
    %v1169 = vld [vmem:[#allocation4 + $0xac] sm:$0xf]
    %v1170 = vld [vmem:[#allocation4 + $0xb0] sm:$0xf]
    %v1171 = vld [vmem:[#allocation4 + $0xb4] sm:$0xf]
    %v1172 = vld [vmem:[#allocation4 + $0xb8] sm:$0xf]
    %v1173 = vld [vmem:[#allocation4 + $0xbc] sm:$0xf]
    %v1174 = vld [vmem:[#allocation4 + $0xc0] sm:$0xf]
    %v1175 = vld [vmem:[#allocation4 + $0xc4] sm:$0xf]
    %v1176 = vld [vmem:[#allocation4 + $0xc8] sm:$0xf]
    %v1177 = vld [vmem:[#allocation4 + $0xcc] sm:$0xf]
    %v1178 = vld [vmem:[#allocation4 + $0xd0] sm:$0xf]
    %v1179 = vld [vmem:[#allocation4 + $0xd4] sm:$0xf]
    %v1180 = vld [vmem:[#allocation4 + $0xd8] sm:$0xf]
    %v1181 = vld [vmem:[#allocation4 + $0xdc] sm:$0xf]
    %v1182 = vld [vmem:[#allocation4 + $0xe0] sm:$0xf]
    %v1183 = vld [vmem:[#allocation4 + $0xe4] sm:$0xf]
    %v1184 = vld [vmem:[#allocation4 + $0xe8] sm:$0xf]
    %v1185 = vld [vmem:[#allocation4 + $0xec] sm:$0xf]
    %v1186 = vld [vmem:[#allocation4 + $0xf0] sm:$0xf]
    %v1187 = vld [vmem:[#allocation4 + $0xf4] sm:$0xf]
    %v1188 = vld [vmem:[#allocation4 + $0xf8] sm:$0xf]
    %v1189 = vld [vmem:[#allocation4 + $0xfc] sm:$0xf]
    %v1190 = vld [vmem:[#allocation4 + $0x100] sm:$0xf]
    %v1191 = vld [vmem:[#allocation4 + $0x104] sm:$0xf]
    %v1192 = vld [vmem:[#allocation4 + $0x108] sm:$0xf]
    %v1193 = vld [vmem:[#allocation4 + $0x10c] sm:$0xf]
    %v1194 = vld [vmem:[#allocation4 + $0x110] sm:$0xf]
    %v1195 = vld [vmem:[#allocation4 + $0x114] sm:$0xf]
    %v1196 = vld [vmem:[#allocation4 + $0x118] sm:$0xf]
    %v1197 = vld [vmem:[#allocation4 + $0x11c] sm:$0xf]
    %v1198 = vld [vmem:[#allocation4 + $0x120] sm:$0xf]
    %v1199 = vld [vmem:[#allocation4 + $0x124] sm:$0xf]
    %v1200 = vld [vmem:[#allocation4 + $0x128] sm:$0xf]
    %v1201 = vld [vmem:[#allocation4 + $0x12c] sm:$0xf]
    %v1202 = vld [vmem:[#allocation4 + $0x130] sm:$0xf]
    %v1203 = vld [vmem:[#allocation4 + $0x134] sm:$0xf]
    %v1204 = vld [vmem:[#allocation4 + $0x138] sm:$0xf]
    %v1205 = vld [vmem:[#allocation4 + $0x13c] sm:$0xf]
    %v1206 = vld [vmem:[#allocation4 + $0x140] sm:$0xf]
    %v1207 = vld [vmem:[#allocation4 + $0x144] sm:$0xf]
    %v1208 = vld [vmem:[#allocation4 + $0x148] sm:$0xf]
    %v1209 = vld [vmem:[#allocation4 + $0x14c] sm:$0xf]
    %v1210 = vld [vmem:[#allocation4 + $0x150] sm:$0xf]
    %v1211 = vld [vmem:[#allocation4 + $0x154] sm:$0xf]
    %v1212 = vld [vmem:[#allocation4 + $0x158] sm:$0xf]
    %v1213 = vld [vmem:[#allocation4 + $0x15c] sm:$0xf]
    %v1214 = vld [vmem:[#allocation4 + $0x160] sm:$0xf]
    %v1215 = vld [vmem:[#allocation4 + $0x164] sm:$0xf]
    %v1216 = vld [vmem:[#allocation4 + $0x168] sm:$0xf]
    %v1217 = vld [vmem:[#allocation4 + $0x16c] sm:$0xf]
    %v1218 = vld [vmem:[#allocation4 + $0x170] sm:$0xf]
    %v1219 = vld [vmem:[#allocation4 + $0x174] sm:$0xf]
    %v1220 = vld [vmem:[#allocation4 + $0x178] sm:$0xf]
    %v1221 = vld [vmem:[#allocation4 + $0x17c] sm:$0xf]
    %v1222 = vld [vmem:[#allocation4 + $0x180] sm:$0xf]
    %v1223 = vld [vmem:[#allocation4 + $0x184] sm:$0xf]
    %v1224 = vld [vmem:[#allocation4 + $0x188] sm:$0xf]
    %v1225 = vld [vmem:[#allocation4 + $0x18c] sm:$0xf]
    %v1226 = vld [vmem:[#allocation4 + $0x190] sm:$0xf]
    %v1227 = vld [vmem:[#allocation4 + $0x194] sm:$0xf]
    %v1228 = vld [vmem:[#allocation4 + $0x198] sm:$0xf]
    %v1229 = vld [vmem:[#allocation4 + $0x19c] sm:$0xf]
    %v1230 = vld [vmem:[#allocation4 + $0x1a0] sm:$0xf]
    %v1231 = vld [vmem:[#allocation4 + $0x1a4] sm:$0xf]
    %v1232 = vld [vmem:[#allocation4 + $0x1a8] sm:$0xf]
    %v1233 = vld [vmem:[#allocation4 + $0x1ac] sm:$0xf]
    %v1234 = vld [vmem:[#allocation4 + $0x1b0] sm:$0xf]
    %v1235 = vld [vmem:[#allocation4 + $0x1b4] sm:$0xf]
    %v1236 = vld [vmem:[#allocation4 + $0x1b8] sm:$0xf]
    %v1237 = vld [vmem:[#allocation4 + $0x1bc] sm:$0xf]
    %v1238 = vld [vmem:[#allocation4 + $0x1c0] sm:$0xf]
    %v1239 = vld [vmem:[#allocation4 + $0x1c4] sm:$0xf]
    %v1240 = vld [vmem:[#allocation4 + $0x1c8] sm:$0xf]
    %v1241 = vld [vmem:[#allocation4 + $0x1cc] sm:$0xf]
    %v1242 = vld [vmem:[#allocation4 + $0x1d0] sm:$0xf]
    %v1243 = vld [vmem:[#allocation4 + $0x1d4] sm:$0xf]
    %v1244 = vld [vmem:[#allocation4 + $0x1d8] sm:$0xf]
    %v1245 = vld [vmem:[#allocation4 + $0x1dc] sm:$0xf]
    %v1246 = vld [vmem:[#allocation4 + $0x1e0] sm:$0xf]
    %v1247 = vld [vmem:[#allocation4 + $0x1e4] sm:$0xf]
    %v1248 = vld [vmem:[#allocation4 + $0x1e8] sm:$0xf]
    %v1249 = vld [vmem:[#allocation4 + $0x1ec] sm:$0xf]
    %v1250 = vld [vmem:[#allocation4 + $0x1f0] sm:$0xf]
    %v1251 = vld [vmem:[#allocation4 + $0x1f4] sm:$0xf]
    %v1252 = vld [vmem:[#allocation4 + $0x1f8] sm:$0xf]
    %v1253 = vld [vmem:[#allocation4 + $0x1fc] sm:$0xf]
    %v1254 = vld [vmem:[#allocation4 + $0x200] sm:$0xf]
    %v1255 = vld [vmem:[#allocation4 + $0x204] sm:$0xf]
    %v1256 = vld [vmem:[#allocation4 + $0x208] sm:$0xf]
    %v1257 = vld [vmem:[#allocation4 + $0x20c] sm:$0xf]
    %v1258 = vld [vmem:[#allocation4 + $0x210] sm:$0xf]
    %v1259 = vld [vmem:[#allocation4 + $0x214] sm:$0xf]
    %v1260 = vld [vmem:[#allocation4 + $0x218] sm:$0xf]
    %v1261 = vld [vmem:[#allocation4 + $0x21c] sm:$0xf]
    %v1262 = vld [vmem:[#allocation4 + $0x220] sm:$0xf]
    %v1263 = vld [vmem:[#allocation4 + $0x224] sm:$0xf]
    %v1264 = vld [vmem:[#allocation4 + $0x228] sm:$0xf]
    %v1265 = vld [vmem:[#allocation4 + $0x22c] sm:$0xf]
    %v1266 = vld [vmem:[#allocation4 + $0x230] sm:$0xf]
    %v1267 = vld [vmem:[#allocation4 + $0x234] sm:$0xf]
    %v1268 = vld [vmem:[#allocation4 + $0x238] sm:$0xf]
    %v1269 = vld [vmem:[#allocation4 + $0x23c] sm:$0xf]
    %v1414 = vunpack.c.l.b16 %v1126
    %v1415 = vunpack.c.l.b16 %v1127
    %v1416 = vunpack.c.l.b16 %v1128
    %v1417 = vunpack.c.l.b16 %v1129
    %v1418 = vunpack.c.l.b16 %v1130
    %v1419 = vunpack.c.l.b16 %v1131
    %v1420 = vunpack.c.l.b16 %v1132
    %v1421 = vunpack.c.l.b16 %v1133
    %v1422 = vunpack.c.l.b16 %v1134
    %v1423 = vunpack.c.l.b16 %v1135
    %v1424 = vunpack.c.l.b16 %v1136
    %v1425 = vunpack.c.l.b16 %v1137
    %v1426 = vunpack.c.l.b16 %v1138
    %v1427 = vunpack.c.l.b16 %v1139
    %v1428 = vunpack.c.l.b16 %v1140
    %v1429 = vunpack.c.l.b16 %v1141
    %v1430 = vunpack.c.l.b16 %v1142
    %v1431 = vunpack.c.l.b16 %v1143
    %v1432 = vunpack.c.l.b16 %v1144
    %v1433 = vunpack.c.l.b16 %v1145
    %v1434 = vunpack.c.l.b16 %v1146
    %v1435 = vunpack.c.l.b16 %v1147
    %v1436 = vunpack.c.l.b16 %v1148
    %v1437 = vunpack.c.l.b16 %v1149
    %v1438 = vunpack.c.l.b16 %v1150
    %v1439 = vunpack.c.l.b16 %v1151
    %v1440 = vunpack.c.l.b16 %v1152
    %v1441 = vunpack.c.l.b16 %v1153
    %v1442 = vunpack.c.l.b16 %v1154
    %v1443 = vunpack.c.l.b16 %v1155
    %v1444 = vunpack.c.l.b16 %v1156
    %v1445 = vunpack.c.l.b16 %v1157
    %v1446 = vunpack.c.l.b16 %v1158
    %v1447 = vunpack.c.l.b16 %v1159
    %v1448 = vunpack.c.l.b16 %v1160
    %v1449 = vunpack.c.l.b16 %v1161
    %v1450 = vunpack.c.l.b16 %v1162
    %v1451 = vunpack.c.l.b16 %v1163
    %v1452 = vunpack.c.l.b16 %v1164
    %v1453 = vunpack.c.l.b16 %v1165
    %v1454 = vunpack.c.l.b16 %v1166
    %v1455 = vunpack.c.l.b16 %v1167
    %v1456 = vunpack.c.l.b16 %v1168
    %v1457 = vunpack.c.l.b16 %v1169
    %v1458 = vunpack.c.l.b16 %v1170
    %v1459 = vunpack.c.l.b16 %v1171
    %v1460 = vunpack.c.l.b16 %v1172
    %v1461 = vunpack.c.l.b16 %v1173
    %v1462 = vunpack.c.l.b16 %v1174
    %v1463 = vunpack.c.l.b16 %v1175
    %v1464 = vunpack.c.l.b16 %v1176
    %v1465 = vunpack.c.l.b16 %v1177
    %v1466 = vunpack.c.l.b16 %v1178
    %v1467 = vunpack.c.l.b16 %v1179
    %v1468 = vunpack.c.l.b16 %v1180
    %v1469 = vunpack.c.l.b16 %v1181
    %v1470 = vunpack.c.l.b16 %v1182
    %v1471 = vunpack.c.l.b16 %v1183
    %v1472 = vunpack.c.l.b16 %v1184
    %v1473 = vunpack.c.l.b16 %v1185
    %v1474 = vunpack.c.l.b16 %v1186
    %v1475 = vunpack.c.l.b16 %v1187
    %v1476 = vunpack.c.l.b16 %v1188
    %v1477 = vunpack.c.l.b16 %v1189
    %v1478 = vunpack.c.l.b16 %v1190
    %v1479 = vunpack.c.l.b16 %v1191
    %v1480 = vunpack.c.l.b16 %v1192
    %v1481 = vunpack.c.l.b16 %v1193
    %v1482 = vunpack.c.l.b16 %v1194
    %v1483 = vunpack.c.l.b16 %v1195
    %v1484 = vunpack.c.l.b16 %v1196
    %v1485 = vunpack.c.l.b16 %v1197
    %v1486 = vunpack.c.l.b16 %v1198
    %v1487 = vunpack.c.l.b16 %v1199
    %v1488 = vunpack.c.l.b16 %v1200
    %v1489 = vunpack.c.l.b16 %v1201
    %v1490 = vunpack.c.l.b16 %v1202
    %v1491 = vunpack.c.l.b16 %v1203
    %v1492 = vunpack.c.l.b16 %v1204
    %v1493 = vunpack.c.l.b16 %v1205
    %v1494 = vunpack.c.l.b16 %v1206
    %v1495 = vunpack.c.l.b16 %v1207
    %v1496 = vunpack.c.l.b16 %v1208
    %v1497 = vunpack.c.l.b16 %v1209
    %v1498 = vunpack.c.l.b16 %v1210
    %v1499 = vunpack.c.l.b16 %v1211
    %v1500 = vunpack.c.l.b16 %v1212
    %v1501 = vunpack.c.l.b16 %v1213
    %v1502 = vunpack.c.l.b16 %v1214
    %v1503 = vunpack.c.l.b16 %v1215
    %v1504 = vunpack.c.l.b16 %v1216
    %v1505 = vunpack.c.l.b16 %v1217
    %v1506 = vunpack.c.l.b16 %v1218
    %v1507 = vunpack.c.l.b16 %v1219
    %v1508 = vunpack.c.l.b16 %v1220
    %v1509 = vunpack.c.l.b16 %v1221
    %v1510 = vunpack.c.l.b16 %v1222
    %v1511 = vunpack.c.l.b16 %v1223
    %v1512 = vunpack.c.l.b16 %v1224
    %v1513 = vunpack.c.l.b16 %v1225
    %v1514 = vunpack.c.l.b16 %v1226
    %v1515 = vunpack.c.l.b16 %v1227
    %v1516 = vunpack.c.l.b16 %v1228
    %v1517 = vunpack.c.l.b16 %v1229
    %v1518 = vunpack.c.l.b16 %v1230
    %v1519 = vunpack.c.l.b16 %v1231
    %v1520 = vunpack.c.l.b16 %v1232
    %v1521 = vunpack.c.l.b16 %v1233
    %v1522 = vunpack.c.l.b16 %v1234
    %v1523 = vunpack.c.l.b16 %v1235
    %v1524 = vunpack.c.l.b16 %v1236
    %v1525 = vunpack.c.l.b16 %v1237
    %v1526 = vunpack.c.l.b16 %v1238
    %v1527 = vunpack.c.l.b16 %v1239
    %v1528 = vunpack.c.l.b16 %v1240
    %v1529 = vunpack.c.l.b16 %v1241
    %v1530 = vunpack.c.l.b16 %v1242
    %v1531 = vunpack.c.l.b16 %v1243
    %v1532 = vunpack.c.l.b16 %v1244
    %v1533 = vunpack.c.l.b16 %v1245
    %v1534 = vunpack.c.l.b16 %v1246
    %v1535 = vunpack.c.l.b16 %v1247
    %v1536 = vunpack.c.l.b16 %v1248
    %v1537 = vunpack.c.l.b16 %v1249
    %v1538 = vunpack.c.l.b16 %v1250
    %v1539 = vunpack.c.l.b16 %v1251
    %v1540 = vunpack.c.l.b16 %v1252
    %v1541 = vunpack.c.l.b16 %v1253
    %v1542 = vunpack.c.l.b16 %v1254
    %v1543 = vunpack.c.l.b16 %v1255
    %v1544 = vunpack.c.l.b16 %v1256
    %v1545 = vunpack.c.l.b16 %v1257
    %v1546 = vunpack.c.l.b16 %v1258
    %v1547 = vunpack.c.l.b16 %v1259
    %v1548 = vunpack.c.l.b16 %v1260
    %v1549 = vunpack.c.l.b16 %v1261
    %v1550 = vunpack.c.l.b16 %v1262
    %v1551 = vunpack.c.l.b16 %v1263
    %v1552 = vunpack.c.l.b16 %v1264
    %v1553 = vunpack.c.l.b16 %v1265
    %v1554 = vunpack.c.l.b16 %v1266
    %v1555 = vunpack.c.l.b16 %v1267
    %v1556 = vunpack.c.l.b16 %v1268
    %v1557 = vunpack.c.l.b16 %v1269
    %v1558 = vpack.c.b16 %v1415, %v1414
    %v1559 = vpack.c.b16 %v1417, %v1416
    %v1560 = vpack.c.b16 %v1419, %v1418
    %v1561 = vpack.c.b16 %v1421, %v1420
    %v1562 = vpack.c.b16 %v1423, %v1422
    %v1563 = vpack.c.b16 %v1425, %v1424
    %v1564 = vpack.c.b16 %v1427, %v1426
    %v1565 = vpack.c.b16 %v1429, %v1428
    %v1566 = vpack.c.b16 %v1431, %v1430
    %v1567 = vpack.c.b16 %v1433, %v1432
    %v1568 = vpack.c.b16 %v1435, %v1434
    %v1569 = vpack.c.b16 %v1437, %v1436
    %v1570 = vpack.c.b16 %v1439, %v1438
    %v1571 = vpack.c.b16 %v1441, %v1440
    %v1572 = vpack.c.b16 %v1443, %v1442
    %v1573 = vpack.c.b16 %v1445, %v1444
    %v1574 = vpack.c.b16 %v1447, %v1446
    %v1575 = vpack.c.b16 %v1449, %v1448
    %v1576 = vpack.c.b16 %v1451, %v1450
    %v1577 = vpack.c.b16 %v1453, %v1452
    %v1578 = vpack.c.b16 %v1455, %v1454
    %v1579 = vpack.c.b16 %v1457, %v1456
    %v1580 = vpack.c.b16 %v1459, %v1458
    %v1581 = vpack.c.b16 %v1461, %v1460
    %v1582 = vpack.c.b16 %v1463, %v1462
    %v1583 = vpack.c.b16 %v1465, %v1464
    %v1584 = vpack.c.b16 %v1467, %v1466
    %v1585 = vpack.c.b16 %v1469, %v1468
    %v1586 = vpack.c.b16 %v1471, %v1470
    %v1587 = vpack.c.b16 %v1473, %v1472
    %v1588 = vpack.c.b16 %v1475, %v1474
    %v1589 = vpack.c.b16 %v1477, %v1476
    %v1590 = vpack.c.b16 %v1479, %v1478
    %v1591 = vpack.c.b16 %v1481, %v1480
    %v1592 = vpack.c.b16 %v1483, %v1482
    %v1593 = vpack.c.b16 %v1485, %v1484
    %v1594 = vpack.c.b16 %v1487, %v1486
    %v1595 = vpack.c.b16 %v1489, %v1488
    %v1596 = vpack.c.b16 %v1491, %v1490
    %v1597 = vpack.c.b16 %v1493, %v1492
    %v1598 = vpack.c.b16 %v1495, %v1494
    %v1599 = vpack.c.b16 %v1497, %v1496
    %v1600 = vpack.c.b16 %v1499, %v1498
    %v1601 = vpack.c.b16 %v1501, %v1500
    %v1602 = vpack.c.b16 %v1503, %v1502
    %v1603 = vpack.c.b16 %v1505, %v1504
    %v1604 = vpack.c.b16 %v1507, %v1506
    %v1605 = vpack.c.b16 %v1509, %v1508
    %v1606 = vpack.c.b16 %v1511, %v1510
    %v1607 = vpack.c.b16 %v1513, %v1512
    %v1608 = vpack.c.b16 %v1515, %v1514
    %v1609 = vpack.c.b16 %v1517, %v1516
    %v1610 = vpack.c.b16 %v1519, %v1518
    %v1611 = vpack.c.b16 %v1521, %v1520
    %v1612 = vpack.c.b16 %v1523, %v1522
    %v1613 = vpack.c.b16 %v1525, %v1524
    %v1614 = vpack.c.b16 %v1527, %v1526
    %v1615 = vpack.c.b16 %v1529, %v1528
    %v1616 = vpack.c.b16 %v1531, %v1530
    %v1617 = vpack.c.b16 %v1533, %v1532
    %v1618 = vpack.c.b16 %v1535, %v1534
    %v1619 = vpack.c.b16 %v1537, %v1536
    %v1620 = vpack.c.b16 %v1539, %v1538
    %v1621 = vpack.c.b16 %v1541, %v1540
    %v1622 = vpack.c.b16 %v1543, %v1542
    %v1623 = vpack.c.b16 %v1545, %v1544
    %v1624 = vpack.c.b16 %v1547, %v1546
    %v1625 = vpack.c.b16 %v1549, %v1548
    %v1626 = vpack.c.b16 %v1551, %v1550
    %v1627 = vpack.c.b16 %v1553, %v1552
    %v1628 = vpack.c.b16 %v1555, %v1554
    %v1629 = vpack.c.b16 %v1557, %v1556
    %1702 = vmatprep.subr.bf16.mxu0 0
    %1703 = vmatpush1.bf16.msra.mxu0 %v1565
    %1704 = vmatprep.subr.bf16.mxu0 0
    %1705 = vmatpush1.bf16.msra.mxu0 %v1564
    %1706 = vmatprep.subr.bf16.mxu0 0
    %1707 = vmatpush1.bf16.msra.mxu0 %v1563
    %1708 = vmatprep.subr.bf16.mxu0 0
    %1709 = vmatpush1.bf16.msra.mxu0 %v1562
    %1710 = vmatprep.subr.bf16.mxu0 0
    %1711 = vmatpush1.bf16.msra.mxu0 %v1561
    %1712 = vmatprep.subr.bf16.mxu0 0
    %1713 = vmatpush1.bf16.msra.mxu0 %v1560
    %1714 = vmatprep.subr.bf16.mxu0 0
    %1715 = vmatpush1.bf16.msra.mxu0 %v1559
    %1716 = vmatprep.subr.bf16.mxu0 0
    %1717 = vmatpush1.bf16.msra.mxu0 %v1558
    %1718 = vmatprep.subr.bf16.mxu0 0
    %1719 = vmatpush2.bf16.msra.mxu0 %v1573
    %1720 = vmatprep.subr.bf16.mxu0 0
    %1721 = vmatpush2.bf16.msra.mxu0 %v1572
    %1722 = vmatprep.subr.bf16.mxu0 0
    %1723 = vmatpush2.bf16.msra.mxu0 %v1571
    %1724 = vmatprep.subr.bf16.mxu0 0
    %1725 = vmatpush2.bf16.msra.mxu0 %v1570
    %1726 = vmatprep.subr.bf16.mxu0 0
    %1727 = vmatpush2.bf16.msra.mxu0 %v1569
    %1728 = vmatprep.subr.bf16.mxu0 0
    %1729 = vmatpush2.bf16.msra.mxu0 %v1568
    %1730 = vmatprep.subr.bf16.mxu0 0
    %1731 = vmatpush2.bf16.msra.mxu0 %v1567
    %1732 = vmatprep.subr.bf16.mxu0 0
    %1733 = vmatpush2.bf16.msra.mxu0 %v1566
    %1734 = vmatprep.mubr.bf16.mxu0 %v1118
    %1735 = vmatmul.mubr.bf16.gmra.mxu0 %v1117
    %v1736 = vpop.f32.mrf.mxu0
    %v1737 = vadd.f32 0.0, %v1736
    %v1738 = vpop.f32.mrf.mxu0
    %v1739 = vpop.f32.mrf.mxu0
    %v1740 = vpop.f32.mrf.mxu0
    %1741 = vdwg.mxu0
    %1742 = vmatprep.subr.bf16.mxu0 0
    %1743 = vmatpush1.bf16.msra.mxu0 %v1581
    %1744 = vmatprep.subr.bf16.mxu0 0
    %1745 = vmatpush1.bf16.msra.mxu0 %v1580
    %1746 = vmatprep.subr.bf16.mxu0 0
    %1747 = vmatpush1.bf16.msra.mxu0 %v1579
    %1748 = vmatprep.subr.bf16.mxu0 0
    %1749 = vmatpush1.bf16.msra.mxu0 %v1578
    %1750 = vmatprep.subr.bf16.mxu0 0
    %1751 = vmatpush1.bf16.msra.mxu0 %v1577
    %1752 = vmatprep.subr.bf16.mxu0 0
    %1753 = vmatpush1.bf16.msra.mxu0 %v1576
    %1754 = vmatprep.subr.bf16.mxu0 0
    %1755 = vmatpush1.bf16.msra.mxu0 %v1575
    %1756 = vmatprep.subr.bf16.mxu0 0
    %1757 = vmatpush1.bf16.msra.mxu0 %v1574
    %1758 = vmatprep.subr.bf16.mxu0 0
    %1759 = vmatpush2.bf16.msra.mxu0 %v1589
    %1760 = vmatprep.subr.bf16.mxu0 0
    %1761 = vmatpush2.bf16.msra.mxu0 %v1588
    %1762 = vmatprep.subr.bf16.mxu0 0
    %1763 = vmatpush2.bf16.msra.mxu0 %v1587
    %1764 = vmatprep.subr.bf16.mxu0 0
    %1765 = vmatpush2.bf16.msra.mxu0 %v1586
    %1766 = vmatprep.subr.bf16.mxu0 0
    %1767 = vmatpush2.bf16.msra.mxu0 %v1585
    %1768 = vmatprep.subr.bf16.mxu0 0
    %1769 = vmatpush2.bf16.msra.mxu0 %v1584
    %1770 = vmatprep.subr.bf16.mxu0 0
    %1771 = vmatpush2.bf16.msra.mxu0 %v1583
    %1772 = vmatprep.subr.bf16.mxu0 0
    %1773 = vmatpush2.bf16.msra.mxu0 %v1582
    %1774 = vmatprep.mubr.bf16.mxu0 %v1120
    %1775 = vmatmul.mubr.bf16.gmra.mxu0 %v1119
    %v1776 = vpop.f32.mrf.mxu0
    %v1777 = vadd.f32 %v1737, %v1776
    %v1778 = vpop.f32.mrf.mxu0
    %v1779 = vpop.f32.mrf.mxu0
    %v1780 = vpop.f32.mrf.mxu0
    %1781 = vdwg.mxu0
    %1782 = vmatprep.subr.bf16.mxu0 0
    %1783 = vmatpush1.bf16.msra.mxu0 %v1597
    %1784 = vmatprep.subr.bf16.mxu0 0
    %1785 = vmatpush1.bf16.msra.mxu0 %v1596
    %1786 = vmatprep.subr.bf16.mxu0 0
    %1787 = vmatpush1.bf16.msra.mxu0 %v1595
    %1788 = vmatprep.subr.bf16.mxu0 0
    %1789 = vmatpush1.bf16.msra.mxu0 %v1594
    %1790 = vmatprep.subr.bf16.mxu0 0
    %1791 = vmatpush1.bf16.msra.mxu0 %v1593
    %1792 = vmatprep.subr.bf16.mxu0 0
    %1793 = vmatpush1.bf16.msra.mxu0 %v1592
    %1794 = vmatprep.subr.bf16.mxu0 0
    %1795 = vmatpush1.bf16.msra.mxu0 %v1591
    %1796 = vmatprep.subr.bf16.mxu0 0
    %1797 = vmatpush1.bf16.msra.mxu0 %v1590
    %1798 = vmatprep.subr.bf16.mxu0 0
    %1799 = vmatpush2.bf16.msra.mxu0 %v1605
    %1800 = vmatprep.subr.bf16.mxu0 0
    %1801 = vmatpush2.bf16.msra.mxu0 %v1604
    %1802 = vmatprep.subr.bf16.mxu0 0
    %1803 = vmatpush2.bf16.msra.mxu0 %v1603
    %1804 = vmatprep.subr.bf16.mxu0 0
    %1805 = vmatpush2.bf16.msra.mxu0 %v1602
    %1806 = vmatprep.subr.bf16.mxu0 0
    %1807 = vmatpush2.bf16.msra.mxu0 %v1601
    %1808 = vmatprep.subr.bf16.mxu0 0
    %1809 = vmatpush2.bf16.msra.mxu0 %v1600
    %1810 = vmatprep.subr.bf16.mxu0 0
    %1811 = vmatpush2.bf16.msra.mxu0 %v1599
    %1812 = vmatprep.subr.bf16.mxu0 0
    %1813 = vmatpush2.bf16.msra.mxu0 %v1598
    %1814 = vmatprep.mubr.bf16.mxu0 %v1122
    %1815 = vmatmul.mubr.bf16.gmra.mxu0 %v1121
    %v1816 = vpop.f32.mrf.mxu0
    %v1817 = vadd.f32 %v1777, %v1816
    %v1818 = vpop.f32.mrf.mxu0
    %v1819 = vpop.f32.mrf.mxu0
    %v1820 = vpop.f32.mrf.mxu0
    %1821 = vdwg.mxu0
    %1822 = vmatprep.subr.bf16.mxu0 0
    %1823 = vmatpush1.bf16.msra.mxu0 %v1613
    %1824 = vmatprep.subr.bf16.mxu0 0
    %1825 = vmatpush1.bf16.msra.mxu0 %v1612
    %1826 = vmatprep.subr.bf16.mxu0 0
    %1827 = vmatpush1.bf16.msra.mxu0 %v1611
    %1828 = vmatprep.subr.bf16.mxu0 0
    %1829 = vmatpush1.bf16.msra.mxu0 %v1610
    %1830 = vmatprep.subr.bf16.mxu0 0
    %1831 = vmatpush1.bf16.msra.mxu0 %v1609
    %1832 = vmatprep.subr.bf16.mxu0 0
    %1833 = vmatpush1.bf16.msra.mxu0 %v1608
    %1834 = vmatprep.subr.bf16.mxu0 0
    %1835 = vmatpush1.bf16.msra.mxu0 %v1607
    %1836 = vmatprep.subr.bf16.mxu0 0
    %1837 = vmatpush1.bf16.msra.mxu0 %v1606
    %1838 = vmatprep.subr.bf16.mxu0 0
    %1839 = vmatpush2.bf16.msra.mxu0 %v1621
    %1840 = vmatprep.subr.bf16.mxu0 0
    %1841 = vmatpush2.bf16.msra.mxu0 %v1620
    %1842 = vmatprep.subr.bf16.mxu0 0
    %1843 = vmatpush2.bf16.msra.mxu0 %v1619
    %1844 = vmatprep.subr.bf16.mxu0 0
    %1845 = vmatpush2.bf16.msra.mxu0 %v1618
    %1846 = vmatprep.subr.bf16.mxu0 0
    %1847 = vmatpush2.bf16.msra.mxu0 %v1617
    %1848 = vmatprep.subr.bf16.mxu0 0
    %1849 = vmatpush2.bf16.msra.mxu0 %v1616
    %1850 = vmatprep.subr.bf16.mxu0 0
    %1851 = vmatpush2.bf16.msra.mxu0 %v1615
    %1852 = vmatprep.subr.bf16.mxu0 0
    %1853 = vmatpush2.bf16.msra.mxu0 %v1614
    %1854 = vmatprep.mubr.bf16.mxu0 %v1124
    %1855 = vmatmul.mubr.bf16.gmra.mxu0 %v1123
    %v1856 = vpop.f32.mrf.mxu0
    %v1857 = vadd.f32 %v1817, %v1856
    %v1858 = vpop.f32.mrf.mxu0
    %v1859 = vpop.f32.mrf.mxu0
    %v1860 = vpop.f32.mrf.mxu0
    %1861 = vdwg.mxu0
    %1862 = vmatprep.subr.bf16.mxu0 0
    %1863 = vmatpush1.bf16.msra.mxu0 %v1629
    %1864 = vmatprep.subr.bf16.mxu0 0
    %1865 = vmatpush1.bf16.msra.mxu0 %v1628
    %1866 = vmatprep.subr.bf16.mxu0 0
    %1867 = vmatpush1.bf16.msra.mxu0 %v1627
    %1868 = vmatprep.subr.bf16.mxu0 0
    %1869 = vmatpush1.bf16.msra.mxu0 %v1626
    %1870 = vmatprep.subr.bf16.mxu0 0
    %1871 = vmatpush1.bf16.msra.mxu0 %v1625
    %1872 = vmatprep.subr.bf16.mxu0 0
    %1873 = vmatpush1.bf16.msra.mxu0 %v1624
    %1874 = vmatprep.subr.bf16.mxu0 0
    %1875 = vmatpush1.bf16.msra.mxu0 %v1623
    %1876 = vmatprep.subr.bf16.mxu0 0
    %1877 = vmatpush1.bf16.msra.mxu0 %v1622
    %1878 = vmatprep.subr.bf16.mxu0 0
    %1879 = vmatpush2.bf16.msra.mxu0 0
    %1880 = vmatprep.subr.bf16.mxu0 0
    %1881 = vmatpush2.bf16.msra.mxu0 0
    %1882 = vmatprep.subr.bf16.mxu0 0
    %1883 = vmatpush2.bf16.msra.mxu0 0
    %1884 = vmatprep.subr.bf16.mxu0 0
    %1885 = vmatpush2.bf16.msra.mxu0 0
    %1886 = vmatprep.subr.bf16.mxu0 0
    %1887 = vmatpush2.bf16.msra.mxu0 0
    %1888 = vmatprep.subr.bf16.mxu0 0
    %1889 = vmatpush2.bf16.msra.mxu0 0
    %1890 = vmatprep.subr.bf16.mxu0 0
    %1891 = vmatpush2.bf16.msra.mxu0 0
    %1892 = vmatprep.subr.bf16.mxu0 0
    %1893 = vmatpush2.bf16.msra.mxu0 0
    %1894 = vmatprep.mubr.bf16.mxu0 0
    %1895 = vmatmul.mubr.bf16.gmra.mxu0 %v1125
    %v1896 = vpop.f32.mrf.mxu0
    %v1897 = vadd.f32 %v1857, %v1896
    %v1898 = vpop.f32.mrf.mxu0
    %v1899 = vpop.f32.mrf.mxu0
    %v1900 = vpop.f32.mrf.mxu0
    %1901 = vdwg.mxu0
    %1902 = vst [vmem:[%s3] sm:$0xff] %v1897
    // Predicated region
    $region22: #{kan_forward.1} parent=1 // pred_check
      _
    $region23: #{kan_forward.1} parent=1 // pred_check_branch
      %1904 = sbr.rel (0) target = $region25
    $region24: #{kan_forward.1} parent=1 // pred_region
      _
    $region25: #{kan_forward.1} parent=1 // pred_fallthru
      _
    // Predicated region
    $region26: #{kan_forward.1} parent=1 // pred_check
      _
    $region27: #{kan_forward.1} parent=1 // pred_check_branch
      %1906 = sbr.rel (0) target = $region29
    $region28: #{kan_forward.1} parent=1 // pred_region
      _
    $region29: #{kan_forward.1} parent=1 // pred_fallthru
      _
    %1907 = vsyncpa [#allocation3], 1
    %1908 = vsyncpa [#allocation5], 1

</llo_original>
